<compile_context>
chip_gen: v7x
topology: tpu7x:2x2x1
jax: 0.10.0
libtpu: 0.0.40
codegen_flags: <defaults>
</compile_context>

<pallas_src>
import jax
import jax.numpy as jnp
from jax.experimental import pallas as pl
from jax.experimental.pallas import tpu as pltpu


_SQRT_2_OVER_PI = 0.7978845608028654


def _ffn_kernel(x_ref, w1_ref, b1_ref, w2_ref, b2_ref, o_ref, acc_ref):
    # x_ref: (tm, H) f32/bf16   w1_ref: (H, tmid) bf16   b1_ref: (1, tmid) f32
    # w2_ref: (tmid, H) bf16    b2_ref: (1, H) f32       acc_ref: (tm, H) f32
    m = pl.program_id(1)

    @pl.when(m == 0)
    def _():
        acc_ref[...] = jnp.zeros_like(acc_ref)

    # First linear slice: bf16 operands into the MXU, f32 accumulate, f32 bias add.
    x = x_ref[...].astype(jnp.bfloat16)
    h = jnp.dot(x, w1_ref[...], preferred_element_type=jnp.float32) + b1_ref[...]

    # GELU (tanh approximation; tanh lands on the EUP slot). Kept in f32 for v5e.
    # TODO(synk): torch nn.GELU() defaults to the exact erf form; the tanh
    #             approximation (GPT-2 / minGPT style) deviates by <~5e-4 per act.
    h = 0.5 * h * (1.0 + jnp.tanh(_SQRT_2_OVER_PI * (h + 0.044715 * (h * h * h))))

    # Second linear slice, accumulated over the mid (M) tiles in f32.
    acc_ref[...] += jnp.dot(h.astype(jnp.bfloat16), w2_ref[...],
                            preferred_element_type=jnp.float32)

    @pl.when(m == pl.num_programs(1) - 1)
    def _():
        o_ref[...] = (acc_ref[...] + b2_ref[...]).astype(o_ref.dtype)


def prepare_ffn_params(w1, b1, w2, b2, *, compute_dtype=jnp.bfloat16):
    """One-time param prep (hoisted out of the forward): transpose + bf16 cast.

    w1: (M, H), b1: (M,), w2: (H, M), b2: (H,)  [nn.Linear layout]
    Returns (w1t (H,M) bf16, b1 (1,M) f32, w2t (M,H) bf16, b2 (1,H) f32).
    """
    M, H = w1.shape
    assert w2.shape == (H, M) and b1.shape == (M,) and b2.shape == (H,)
    w1t = jnp.asarray(w1, compute_dtype).T
    w2t = jnp.asarray(w2, compute_dtype).T
    b1r = jnp.asarray(b1, jnp.float32).reshape(1, M)
    b2r = jnp.asarray(b2, jnp.float32).reshape(1, H)
    return w1t, b1r, w2t, b2r


def _largest_divisor_tile(n, target, granule):
    """Largest t <= target with n % t == 0 and (t % granule == 0 or t == n)."""
    t = min(target, n)
    for cand in range(t, 0, -1):
        if n % cand == 0 and (cand % granule == 0 or cand == n):
            return cand
    return n  # no good divisor: caller decides whether to pad instead


def _vmem_budget_bytes(tm, tmid, H, n_mid, act_bytes, w_bytes=2):
    io = 2 * tm * H * act_bytes * 2                       # x + out tiles, 2 buffers each
    wbuf = 1 if n_mid == 1 else 2                         # resident vs pipelined weights
    weights = wbuf * (H * tmid * w_bytes + tmid * 4 + tmid * H * w_bytes) + H * 4
    acc = tm * H * 4
    est = io + weights + acc
    return int(min(max(2 * est, 16 * 1024 * 1024), 64 * 1024 * 1024))


def _build_ffn_call(Np, H, M, tm, tmid, out_dtype, act_bytes, *, single_buffer_resident):
    n_rows, n_mid = Np // tm, M // tmid

    if single_buffer_resident:
        resident_kw = dict(pipeline_mode=pl.Buffered(1))      # constant index -> 1 buffer
        weight_kw = resident_kw if n_mid == 1 else {}          # weights cycle when M-tiled
    else:
        resident_kw, weight_kw = {}, {}

    grid_spec = pltpu.PrefetchScalarGridSpec(
        num_scalar_prefetch=0,
        grid=(n_rows, n_mid),
        in_specs=[
            pl.BlockSpec((tm, H), lambda i, m: (i, 0)),                 # x row tile
            pl.BlockSpec((H, tmid), lambda i, m: (0, m), **weight_kw),  # W1^T slice
            pl.BlockSpec((1, tmid), lambda i, m: (0, m), **weight_kw),  # b1 slice
            pl.BlockSpec((tmid, H), lambda i, m: (m, 0), **weight_kw),  # W2^T slice
            pl.BlockSpec((1, H), lambda i, m: (0, 0), **resident_kw),   # b2 (resident)
        ],
        out_specs=pl.BlockSpec((tm, H), lambda i, m: (i, 0)),
        scratch_shapes=[pltpu.VMEM((tm, H), jnp.float32)],
    )

    return pl.pallas_call(
        _ffn_kernel,
        out_shape=jax.ShapeDtypeStruct((Np, H), out_dtype),
        grid_spec=grid_spec,
        compiler_params=pltpu.CompilerParams(
            dimension_semantics=("parallel", "arbitrary"),
            vmem_limit_bytes=_vmem_budget_bytes(tm, tmid, H, n_mid, act_bytes),
        ),
    )


def position_wise_ffn(x, w1t, b1r, w2t, b2r, *, block_rows=512, block_mid=1024):
    """PositionWiseFFN forward: linear2(gelu(linear1(x))).

    Takes params already prepared by `prepare_ffn_params`.
    """
    orig_shape = x.shape
    H = x.shape[-1]
    Hw, M = w1t.shape
    assert Hw == H and w2t.shape == (M, H)
    assert b1r.shape == (1, M) and b2r.shape == (1, H)

    xf = x.reshape(-1, H)
    N = xf.shape[0]

    # Row tile: prefer a divisor of N (no pad / slice HBM copies); pad only if the
    # row count is too ragged for any sublane-dense divisor.
    tm = _largest_divisor_tile(N, block_rows, 8)
    pad_rows = 0
    if tm > block_rows:
        tm = max(8, (min(block_rows, N) // 8) * 8)
        pad_rows = (-N) % tm
        xf = jnp.pad(xf, ((0, pad_rows), (0, 0)))
    Np = xf.shape[0]

    # Mid (FFN hidden) tile: lane-dense divisor of M, else keep M un-tiled.
    tmid = _largest_divisor_tile(M, block_mid, 128)

    act_bytes = jnp.dtype(x.dtype).itemsize
    try:
        call = _build_ffn_call(Np, H, M, tm, tmid, x.dtype, act_bytes,
                               single_buffer_resident=True)
        out = call(xf, w1t, b1r, w2t, b2r)
    except Exception:
        # Fallback for JAX versions without BlockSpec pipeline_mode single-buffering.
        call = _build_ffn_call(Np, H, M, tm, tmid, x.dtype, act_bytes,
                               single_buffer_resident=False)
        out = call(xf, w1t, b1r, w2t, b2r)

    if pad_rows:
        out = out[:N]
    return out.reshape(orig_shape)


def _reference_bf16_tanh(x, w1, b1, w2, b2):
    """Pure-JAX reference mimicking the kernel numerics (bf16 operands, f32 acc)."""
    xb = x.astype(jnp.bfloat16)
    w1b = w1.astype(jnp.bfloat16)
    w2b = w2.astype(jnp.bfloat16)
    h = jnp.einsum("...h,mh->...m", xb, w1b, preferred_element_type=jnp.float32) + b1
    h = jax.nn.gelu(h, approximate=True)
    y = jnp.einsum("...m,hm->...h", h.astype(jnp.bfloat16), w2b,
                   preferred_element_type=jnp.float32) + b2
    return y.astype(x.dtype)


def _reference_exact(x, w1, b1, w2, b2):
    """Pure-JAX f32 reference matching torch nn.GELU() (exact erf) semantics."""
    h = jnp.einsum("...h,mh->...m", x, w1) + b1
    h = jax.nn.gelu(h, approximate=False)
    return jnp.einsum("...m,hm->...h", h, w2) + b2


if __name__ == "__main__":
    key = jax.random.PRNGKey(0)
    kx, kw1, kb1, kw2, kb2 = jax.random.split(key, 5)

    B, T = 2, 64
    hidden_num, mid_hidden_num = 128, 256     # lane-dense (multiples of 128)

    x = jax.random.normal(kx, (B, T, hidden_num), dtype=jnp.float32)

    # Emulate PyTorch nn.Linear default init: U(-1/sqrt(fan_in), +1/sqrt(fan_in)).
    lim1 = 1.0 / (hidden_num ** 0.5)
    lim2 = 1.0 / (mid_hidden_num ** 0.5)
    w1 = jax.random.uniform(kw1, (mid_hidden_num, hidden_num), jnp.float32, -lim1, lim1)
    b1 = jax.random.uniform(kb1, (mid_hidden_num,), jnp.float32, -lim1, lim1)
    w2 = jax.random.uniform(kw2, (hidden_num, mid_hidden_num), jnp.float32, -lim2, lim2)
    b2 = jax.random.uniform(kb2, (hidden_num,), jnp.float32, -lim2, lim2)

    # One-time parameter preparation (transpose + bf16 cast), hoisted out of forward.
    params = prepare_ffn_params(w1, b1, w2, b2)

    # block_rows=64 -> row grid of 2 (exercises the "parallel"/megacore axis);
    # block_mid=128 -> mid grid of 2 (exercises the f32-accumulator reduction path).
    out = position_wise_ffn(x, *params, block_rows=64, block_mid=128)
    out = jax.block_until_ready(out)
    assert out.shape == x.shape

    # Tight check: kernel vs identical bf16/tanh-GELU math in plain JAX.
    ref_tanh = _reference_bf16_tanh(x, w1, b1, w2, b2)
    assert jnp.allclose(out, ref_tanh, atol=1e-3, rtol=1e-3), \
        "mismatch vs bf16 tanh-GELU reference"

    # Fidelity check: kernel vs the exact nn.GELU() (erf, f32) module semantics.
    ref_exact = _reference_exact(x, w1, b1, w2, b2)
    assert jnp.allclose(out, ref_exact, atol=3e-2, rtol=3e-2), \
        "mismatch vs exact-GELU f32 reference"

    print("KERNEL_OK")
</pallas_src>

<mosaic_0001>
module attributes {stable_mosaic.version = 11 : i64} {
  func.func @_ffn_kernel(%arg0: i32, %arg1: i32, %arg2: memref<64x128xf32, #tpu.memory_space<vmem>>, %arg3: memref<128x128xbf16, #tpu.memory_space<vmem>>, %arg4: memref<1x128xf32, #tpu.memory_space<vmem>>, %arg5: memref<128x128xbf16, #tpu.memory_space<vmem>>, %arg6: memref<1x128xf32, #tpu.memory_space<vmem>>, %arg7: memref<64x128xf32, #tpu.memory_space<vmem>>, %arg8: memref<64x128xf32, #tpu.memory_space<vmem>>) attributes {dimension_semantics = [#tpu.dimension_semantics<parallel>, #tpu.dimension_semantics<arbitrary>], iteration_bounds = array<i64: 2, 2>, scalar_prefetch = 0 : i64, scratch_operands = 1 : i64, tpu.core_type = #tpu.core_type<tc>, window_params = [{transform_indices = @transform_0, window_bounds = array<i64: 64, 128>}, {transform_indices = @transform_1, window_bounds = array<i64: 128, 128>}, {transform_indices = @transform_2, window_bounds = array<i64: 1, 128>}, {transform_indices = @transform_3, window_bounds = array<i64: 128, 128>}, {pipeline_mode = #tpu.pipeline_mode<synchronous>, transform_indices = @transform_4, window_bounds = array<i64: 1, 128>}, {transform_indices = @transform_5, window_bounds = array<i64: 64, 128>}]} {
    %c0_i32 = arith.constant 0 : i32
    %0 = arith.cmpi eq, %arg1, %c0_i32 : i32
    %1 = arith.extui %0 : i1 to i32
    %c0_i32_0 = arith.constant 0 : i32
    %2 = arith.cmpi ne, %1, %c0_i32_0 : i32
    scf.if %2 {
      %cst_18 = arith.constant 0.000000e+00 : f32
      %32 = vector.broadcast %cst_18 : f32 to vector<64x128xf32>
      %c0_19 = arith.constant 0 : index
      %c0_20 = arith.constant 0 : index
      %33 = vector.load %arg8[%c0_19, %c0_20] : memref<64x128xf32, #tpu.memory_space<vmem>>, vector<64x128xf32>
      tpu.vector_store %arg8[%c0_19, %c0_20], %32 {strides = array<i32>} : memref<64x128xf32, #tpu.memory_space<vmem>>, vector<64x128xf32>,
    } else {
    }
    %c0 = arith.constant 0 : index
    %c0_1 = arith.constant 0 : index
    %3 = vector.load %arg2[%c0, %c0_1] : memref<64x128xf32, #tpu.memory_space<vmem>>, vector<64x128xf32>
    %4 = arith.truncf %3 : vector<64x128xf32> to vector<64x128xbf16>
    %c0_2 = arith.constant 0 : index
    %c0_3 = arith.constant 0 : index
    %5 = vector.load %arg3[%c0_2, %c0_3] : memref<128x128xbf16, #tpu.memory_space<vmem>>, vector<128x128xbf16>
    %cst = arith.constant dense<0.000000e+00> : vector<64x128xf32>
    %6 = tpu.matmul %4, %5, %cst {dimension_numbers = #tpu.dot_dimension_numbers<[1], [0], [0], [1], [0, 0, 1, 1], [], []>} : vector<64x128xbf16>, vector<128x128xbf16>, vector<64x128xf32> -> vector<64x128xf32>
    %c0_4 = arith.constant 0 : index
    %c0_5 = arith.constant 0 : index
    %7 = vector.load %arg4[%c0_4, %c0_5] : memref<1x128xf32, #tpu.memory_space<vmem>>, vector<1x128xf32>
    %8 = vector.broadcast %7 : vector<1x128xf32> to vector<64x128xf32>
    %9 = arith.addf %6, %8 : vector<64x128xf32>
    %cst_6 = arith.constant 5.000000e-01 : f32
    %10 = vector.broadcast %cst_6 : f32 to vector<64x128xf32>
    %11 = arith.mulf %10, %9 : vector<64x128xf32>
    %12 = arith.mulf %9, %9 : vector<64x128xf32>
    %13 = arith.mulf %12, %9 : vector<64x128xf32>
    %cst_7 = arith.constant 4.471500e-02 : f32
    %14 = vector.broadcast %cst_7 : f32 to vector<64x128xf32>
    %15 = arith.mulf %14, %13 : vector<64x128xf32>
    %16 = arith.addf %9, %15 : vector<64x128xf32>
    %cst_8 = arith.constant 0.797884583 : f32
    %17 = vector.broadcast %cst_8 : f32 to vector<64x128xf32>
    %18 = arith.mulf %17, %16 : vector<64x128xf32>
    %19 = math.tanh %18 : vector<64x128xf32>
    %cst_9 = arith.constant 1.000000e+00 : f32
    %20 = vector.broadcast %cst_9 : f32 to vector<64x128xf32>
    %21 = arith.addf %20, %19 : vector<64x128xf32>
    %22 = arith.mulf %11, %21 : vector<64x128xf32>
    %c0_10 = arith.constant 0 : index
    %c0_11 = arith.constant 0 : index
    %23 = vector.load %arg8[%c0_10, %c0_11] : memref<64x128xf32, #tpu.memory_space<vmem>>, vector<64x128xf32>
    %24 = arith.truncf %22 : vector<64x128xf32> to vector<64x128xbf16>
    %c0_12 = arith.constant 0 : index
    %c0_13 = arith.constant 0 : index
    %25 = vector.load %arg5[%c0_12, %c0_13] : memref<128x128xbf16, #tpu.memory_space<vmem>>, vector<128x128xbf16>
    %cst_14 = arith.constant dense<0.000000e+00> : vector<64x128xf32>
    %26 = tpu.matmul %24, %25, %cst_14 {dimension_numbers = #tpu.dot_dimension_numbers<[1], [0], [0], [1], [0, 0, 1, 1], [], []>} : vector<64x128xbf16>, vector<128x128xbf16>, vector<64x128xf32> -> vector<64x128xf32>
    %27 = arith.addf %23, %26 : vector<64x128xf32>
    %c0_15 = arith.constant 0 : index
    %c0_16 = arith.constant 0 : index
    %28 = vector.load %arg8[%c0_15, %c0_16] : memref<64x128xf32, #tpu.memory_space<vmem>>, vector<64x128xf32>
    tpu.vector_store %arg8[%c0_15, %c0_16], %27 {strides = array<i32>} : memref<64x128xf32, #tpu.memory_space<vmem>>, vector<64x128xf32>,
    %c1_i32 = arith.constant 1 : i32
    %29 = arith.cmpi eq, %arg1, %c1_i32 : i32
    %30 = arith.extui %29 : i1 to i32
    %c0_i32_17 = arith.constant 0 : i32
    %31 = arith.cmpi ne, %30, %c0_i32_17 : i32
    scf.if %31 {
      %c0_18 = arith.constant 0 : index
      %c0_19 = arith.constant 0 : index
      %32 = vector.load %arg8[%c0_18, %c0_19] : memref<64x128xf32, #tpu.memory_space<vmem>>, vector<64x128xf32>
      %c0_20 = arith.constant 0 : index
      %c0_21 = arith.constant 0 : index
      %33 = vector.load %arg6[%c0_20, %c0_21] : memref<1x128xf32, #tpu.memory_space<vmem>>, vector<1x128xf32>
      %34 = vector.broadcast %33 : vector<1x128xf32> to vector<64x128xf32>
      %35 = arith.addf %32, %34 : vector<64x128xf32>
      %c0_22 = arith.constant 0 : index
      %c0_23 = arith.constant 0 : index
      %36 = vector.load %arg7[%c0_22, %c0_23] : memref<64x128xf32, #tpu.memory_space<vmem>>, vector<64x128xf32>
      tpu.vector_store %arg7[%c0_22, %c0_23], %35 {strides = array<i32>} : memref<64x128xf32, #tpu.memory_space<vmem>>, vector<64x128xf32>,
    } else {
    }
    return
  }
  func.func @transform_0(%arg0: i32, %arg1: i32) -> (i32, i32) {
    %c0_i32 = arith.constant 0 : i32
    %c0_i32_0 = arith.constant 0 : i32
    return %arg0, %c0_i32 : i32, i32
  }
  func.func @transform_1(%arg0: i32, %arg1: i32) -> (i32, i32) {
    %c0_i32 = arith.constant 0 : i32
    %c0_i32_0 = arith.constant 0 : i32
    return %c0_i32, %arg1 : i32, i32
  }
  func.func @transform_2(%arg0: i32, %arg1: i32) -> (i32, i32) {
    %c0_i32 = arith.constant 0 : i32
    %c0_i32_0 = arith.constant 0 : i32
    return %c0_i32, %arg1 : i32, i32
  }
  func.func @transform_3(%arg0: i32, %arg1: i32) -> (i32, i32) {
    %c0_i32 = arith.constant 0 : i32
    %c0_i32_0 = arith.constant 0 : i32
    return %arg1, %c0_i32 : i32, i32
  }
  func.func @transform_4(%arg0: i32, %arg1: i32) -> (i32, i32) {
    %c0_i32 = arith.constant 0 : i32
    %c0_i32_0 = arith.constant 0 : i32
    %c0_i32_1 = arith.constant 0 : i32
    return %c0_i32, %c0_i32_0 : i32, i32
  }
  func.func @transform_5(%arg0: i32, %arg1: i32) -> (i32, i32) {
    %c0_i32 = arith.constant 0 : i32
    %c0_i32_0 = arith.constant 0 : i32
    return %arg0, %c0_i32 : i32, i32
  }
}

module attributes {stable_mosaic.version = 11 : i64} {
  func.func @_ffn_kernel(%arg0: i32, %arg1: i32, %arg2: memref<64x128xf32, #tpu.memory_space<vmem>>, %arg3: memref<128x128xbf16, #tpu.memory_space<vmem>>, %arg4: memref<1x128xf32, #tpu.memory_space<vmem>>, %arg5: memref<128x128xbf16, #tpu.memory_space<vmem>>, %arg6: memref<1x128xf32, #tpu.memory_space<vmem>>, %arg7: memref<64x128xf32, #tpu.memory_space<vmem>>, %arg8: memref<64x128xf32, #tpu.memory_space<vmem>>) attributes {dimension_semantics = [#tpu.dimension_semantics<parallel>, #tpu.dimension_semantics<arbitrary>], iteration_bounds = array<i64: 2, 2>, scalar_prefetch = 0 : i64, scratch_operands = 1 : i64, tpu.core_type = #tpu.core_type<tc>, window_params = [{transform_indices = @transform_0, window_bounds = array<i64: 64, 128>}, {transform_indices = @transform_1, window_bounds = array<i64: 128, 128>}, {transform_indices = @transform_2, window_bounds = array<i64: 1, 128>}, {transform_indices = @transform_3, window_bounds = array<i64: 128, 128>}, {pipeline_mode = #tpu.pipeline_mode<synchronous>, transform_indices = @transform_4, window_bounds = array<i64: 1, 128>}, {transform_indices = @transform_5, window_bounds = array<i64: 64, 128>}]} {
    %c0_i32 = arith.constant 0 : i32
    %0 = arith.cmpi eq, %arg1, %c0_i32 : i32
    %1 = arith.extui %0 : i1 to i32
    %c0_i32_0 = arith.constant 0 : i32
    %2 = arith.cmpi ne, %1, %c0_i32_0 : i32
    scf.if %2 {
      %cst_18 = arith.constant 0.000000e+00 : f32
      %32 = vector.broadcast %cst_18 : f32 to vector<64x128xf32>
      %c0_19 = arith.constant 0 : index
      %c0_20 = arith.constant 0 : index
      %33 = vector.load %arg8[%c0_19, %c0_20] : memref<64x128xf32, #tpu.memory_space<vmem>>, vector<64x128xf32>
      tpu.vector_store %arg8[%c0_19, %c0_20], %32 {strides = array<i32>} : memref<64x128xf32, #tpu.memory_space<vmem>>, vector<64x128xf32>,
    } else {
    }
    %c0 = arith.constant 0 : index
    %c0_1 = arith.constant 0 : index
    %3 = vector.load %arg2[%c0, %c0_1] : memref<64x128xf32, #tpu.memory_space<vmem>>, vector<64x128xf32>
    %4 = arith.truncf %3 : vector<64x128xf32> to vector<64x128xbf16>
    %c0_2 = arith.constant 0 : index
    %c0_3 = arith.constant 0 : index
    %5 = vector.load %arg3[%c0_2, %c0_3] : memref<128x128xbf16, #tpu.memory_space<vmem>>, vector<128x128xbf16>
    %cst = arith.constant dense<0.000000e+00> : vector<64x128xf32>
    %6 = tpu.matmul %4, %5, %cst {dimension_numbers = #tpu.dot_dimension_numbers<[1], [0], [0], [1], [0, 0, 1, 1], [], []>} : vector<64x128xbf16>, vector<128x128xbf16>, vector<64x128xf32> -> vector<64x128xf32>
    %c0_4 = arith.constant 0 : index
    %c0_5 = arith.constant 0 : index
    %7 = vector.load %arg4[%c0_4, %c0_5] : memref<1x128xf32, #tpu.memory_space<vmem>>, vector<1x128xf32>
    %8 = vector.broadcast %7 : vector<1x128xf32> to vector<64x128xf32>
    %9 = arith.addf %6, %8 : vector<64x128xf32>
    %cst_6 = arith.constant 5.000000e-01 : f32
    %10 = vector.broadcast %cst_6 : f32 to vector<64x128xf32>
    %11 = arith.mulf %10, %9 : vector<64x128xf32>
    %12 = arith.mulf %9, %9 : vector<64x128xf32>
    %13 = arith.mulf %12, %9 : vector<64x128xf32>
    %cst_7 = arith.constant 4.471500e-02 : f32
    %14 = vector.broadcast %cst_7 : f32 to vector<64x128xf32>
    %15 = arith.mulf %14, %13 : vector<64x128xf32>
    %16 = arith.addf %9, %15 : vector<64x128xf32>
    %cst_8 = arith.constant 0.797884583 : f32
    %17 = vector.broadcast %cst_8 : f32 to vector<64x128xf32>
    %18 = arith.mulf %17, %16 : vector<64x128xf32>
    %19 = math.tanh %18 : vector<64x128xf32>
    %cst_9 = arith.constant 1.000000e+00 : f32
    %20 = vector.broadcast %cst_9 : f32 to vector<64x128xf32>
    %21 = arith.addf %20, %19 : vector<64x128xf32>
    %22 = arith.mulf %11, %21 : vector<64x128xf32>
    %c0_10 = arith.constant 0 : index
    %c0_11 = arith.constant 0 : index
    %23 = vector.load %arg8[%c0_10, %c0_11] : memref<64x128xf32, #tpu.memory_space<vmem>>, vector<64x128xf32>
    %24 = arith.truncf %22 : vector<64x128xf32> to vector<64x128xbf16>
    %c0_12 = arith.constant 0 : index
    %c0_13 = arith.constant 0 : index
    %25 = vector.load %arg5[%c0_12, %c0_13] : memref<128x128xbf16, #tpu.memory_space<vmem>>, vector<128x128xbf16>
    %cst_14 = arith.constant dense<0.000000e+00> : vector<64x128xf32>
    %26 = tpu.matmul %24, %25, %cst_14 {dimension_numbers = #tpu.dot_dimension_numbers<[1], [0], [0], [1], [0, 0, 1, 1], [], []>} : vector<64x128xbf16>, vector<128x128xbf16>, vector<64x128xf32> -> vector<64x128xf32>
    %27 = arith.addf %23, %26 : vector<64x128xf32>
    %c0_15 = arith.constant 0 : index
    %c0_16 = arith.constant 0 : index
    %28 = vector.load %arg8[%c0_15, %c0_16] : memref<64x128xf32, #tpu.memory_space<vmem>>, vector<64x128xf32>
    tpu.vector_store %arg8[%c0_15, %c0_16], %27 {strides = array<i32>} : memref<64x128xf32, #tpu.memory_space<vmem>>, vector<64x128xf32>,
    %c1_i32 = arith.constant 1 : i32
    %29 = arith.cmpi eq, %arg1, %c1_i32 : i32
    %30 = arith.extui %29 : i1 to i32
    %c0_i32_17 = arith.constant 0 : i32
    %31 = arith.cmpi ne, %30, %c0_i32_17 : i32
    scf.if %31 {
      %c0_18 = arith.constant 0 : index
      %c0_19 = arith.constant 0 : index
      %32 = vector.load %arg8[%c0_18, %c0_19] : memref<64x128xf32, #tpu.memory_space<vmem>>, vector<64x128xf32>
      %c0_20 = arith.constant 0 : index
      %c0_21 = arith.constant 0 : index
      %33 = vector.load %arg6[%c0_20, %c0_21] : memref<1x128xf32, #tpu.memory_space<vmem>>, vector<1x128xf32>
      %34 = vector.broadcast %33 : vector<1x128xf32> to vector<64x128xf32>
      %35 = arith.addf %32, %34 : vector<64x128xf32>
      %c0_22 = arith.constant 0 : index
      %c0_23 = arith.constant 0 : index
      %36 = vector.load %arg7[%c0_22, %c0_23] : memref<64x128xf32, #tpu.memory_space<vmem>>, vector<64x128xf32>
      tpu.vector_store %arg7[%c0_22, %c0_23], %35 {strides = array<i32>} : memref<64x128xf32, #tpu.memory_space<vmem>>, vector<64x128xf32>,
    } else {
    }
    return
  }
  func.func @transform_0(%arg0: i32, %arg1: i32) -> (i32, i32) {
    %c0_i32 = arith.constant 0 : i32
    %c0_i32_0 = arith.constant 0 : i32
    return %arg0, %c0_i32 : i32, i32
  }
  func.func @transform_1(%arg0: i32, %arg1: i32) -> (i32, i32) {
    %c0_i32 = arith.constant 0 : i32
    %c0_i32_0 = arith.constant 0 : i32
    return %c0_i32, %arg1 : i32, i32
  }
  func.func @transform_2(%arg0: i32, %arg1: i32) -> (i32, i32) {
    %c0_i32 = arith.constant 0 : i32
    %c0_i32_0 = arith.constant 0 : i32
    return %c0_i32, %arg1 : i32, i32
  }
  func.func @transform_3(%arg0: i32, %arg1: i32) -> (i32, i32) {
    %c0_i32 = arith.constant 0 : i32
    %c0_i32_0 = arith.constant 0 : i32
    return %arg1, %c0_i32 : i32, i32
  }
  func.func @transform_4(%arg0: i32, %arg1: i32) -> (i32, i32) {
    %c0_i32 = arith.constant 0 : i32
    %c0_i32_0 = arith.constant 0 : i32
    %c0_i32_1 = arith.constant 0 : i32
    return %c0_i32, %c0_i32_0 : i32, i32
  }
  func.func @transform_5(%arg0: i32, %arg1: i32) -> (i32, i32) {
    %c0_i32 = arith.constant 0 : i32
    %c0_i32_0 = arith.constant 0 : i32
    return %arg0, %c0_i32 : i32, i32
  }
}

</mosaic_0001>

<llo_original>
// kernel: tpu_custom_call.1
$region0: #{tpu_custom_call.1}
  #allocation0 [shape = 'u32[]', space=smem, size = 0x4, offset = 0x4, fixed_abs, tag = 'smem constant byte address 0x4 - core index']
  #allocation1 [shape = 'u32[144,128]{1,0:T(1,128)}', space=vmem, size = 0x12000, scoped, tag = 'internal scratch']
  #allocation2 [shape = 'f32[64,128]{1,0:T(8,128)}', space=vmem, size = 0x8000, scoped, tag = 'scratch operand']
  %s0 = inlined_call_operand.hbm [shape: f32[128,128], index: 0, kind: input, shape index: {}]
  %s1 = inlined_call_operand.hbm [shape: bf16[128,256], index: 1, kind: input, shape index: {}]
  %s2 = inlined_call_operand.vmem [shape: f32[1,256], index: 2, kind: input, shape index: {}]
  %s3 = inlined_call_operand.hbm [shape: bf16[256,128], index: 3, kind: input, shape index: {}]
  %s4 = inlined_call_operand.vmem [shape: f32[1,128], index: 4, kind: input, shape index: {}]
  %s5 = inlined_call_operand.hbm [shape: f32[128,128], index: 5, kind: output, shape index: {}]
  %s6 = sld [smem:[#allocation0]]
  $region73: #{tpu_custom_call.1} parent=0
    _
  %s8 = ssub.s32 1, %s6
  %s9 = scalar_select 0, %s8, %s6
  $region1: #{tpu_custom_call.1} parent=0
    #allocation3 [shape = 'u8[65536]{0}', space=vmem, size = 0x10000, scoped, tag = 'input window, operand 0']
    #allocation4 [shape = 's32[2]{0}', space=sflag, size = 0x8, scoped, tag = 'scoped memory for tpu_custom_call.1']
    #allocation5 [shape = 's32[2]{0}', space=sflag, size = 0x8, scoped, tag = 'scoped memory for tpu_custom_call.1']
    #allocation6 [shape = 'u8[65536]{0}', space=vmem, size = 0x10000, scoped, tag = 'input window, operand 1']
    #allocation7 [shape = 's32[2]{0}', space=sflag, size = 0x8, scoped, tag = 'scoped memory for tpu_custom_call.1']
    #allocation8 [shape = 'u8[65536]{0}', space=vmem, size = 0x10000, scoped, tag = 'input window, operand 3']
    #allocation9 [shape = 'u8[65536]{0}', space=vmem, size = 0x10000, scoped, tag = 'output window, operand 0']
    %10 = vsyncpa [#allocation4], 0
    %s11 = scalar_lea.sflag [#allocation4], 1
    %12 = vsyncpa %s11, 0
    %13 = vsyncpa [#allocation7], 0
    %s14 = scalar_lea.sflag [#allocation7], 1
    %15 = vsyncpa %s14, 0
    %16 = vsyncpa [#allocation5], 0
    %s17 = scalar_lea.sflag [#allocation5], 1
    %18 = vsyncpa %s17, 0
    loop: start=0, step=1, limit=6
    $region2: #{tpu_custom_call.1} parent=1 // loop_pre_header
      _
    $region3: #{tpu_custom_call.1} parent=1 // loop_header
      %s20 = sphi 0, %s24
      %p21 = scmp.ge.s32.totalorder %s20, 6
      %s27 = sphi 0, %s39
      %s28 = sphi 0, %s35
      %s29 = sphi 0, %s27
      %s30 = sphi 0, %s28
      %s31 = sphi 0, %s29
      %s32 = sphi 0, %s30
      %s42 = sphi 0, %s44
      %s45 = sphi 0, %s42
      %s46 = sphi 0, %s45
      %s62 = sphi 0, %s46
      %s68 = sphi 0, %s70
      %s71 = sphi 0, %s68
      %s72 = sphi 0, %s71
      %s88 = sphi 0, %s72
      %s94 = sphi 0, %s96
      %s97 = sphi 0, %s94
      %s98 = sphi 0, %s97
      %s114 = sphi 0, %s98
      %s120 = sphi 0, %s122
      %s123 = sphi 0, %s120
      %s124 = sphi 0, %s123
      %s140 = sphi 0, %s124
      %s144 = sphi 0, %s144
      %s146 = sphi 0, %s144
      %s147 = sphi 0, %s146
      %s161 = sphi 0, %s147
      %s167 = sphi 0, %s169
      %s170 = sphi 0, %s167
      %s171 = sphi 0, %s170
      %s187 = sphi 0, %s171
    $region4: #{tpu_custom_call.1} parent=1 // loop_header_branch
      %23 = sbr.rel (%p21) target = $region8
    $region5: #{tpu_custom_call.1} parent=1 // loop_body
      %s25 = ssub.s32 %s20, 1
      %s26 = ssub.s32 %s20, 2
      %s33 = sadd.s32 1, %s28
      %p34 = scmp.ge.s32.totalorder %s33, 2
      %s35 = scalar_select %p34, 0, %s33
      %s36 = sadd.s32 1, %s27
      %s37 = scalar_select %p34, %s36, %s27
      %p38 = scmp.ge.s32.totalorder %s37, 2
      %s39 = scalar_select %p38, 0, %s37
      %s40 = ssub.s32 %s27, %s39
      %p41 = scmp.eq.s32.totalorder %s40, 0
      %s43 = sadd.s32 %s42, 1
      %s44 = scalar_select %p41, %s42, %s43
      %p47 = pneg %p41
      %p48 = scmp.eq.s32.totalorder %s20, 3
      %p49 = por %p47, %p48
      %p50 = scmp.ne.s32.totalorder %s42, %s45
      %p51 = scmp.eq.s32.totalorder %s20, 0
      %p52 = por %p50, %p51
      %p53 = scmp.ne.s32.totalorder %s42, %s45
      %p54 = scmp.eq.s32.totalorder %s25, 3
      %p55 = por %p53, %p54
      %p56 = scmp.ne.s32.totalorder %s45, %s46
      %p57 = scmp.eq.s32.totalorder %s25, 0
      %p58 = por %p56, %p57
      %p59 = scmp.ne.s32.totalorder %s45, %s46
      %p60 = scmp.eq.s32.totalorder %s26, 3
      %p61 = por %p59, %p60
      %p63 = scmp.ne.s32.totalorder %s46, %s62
      %p64 = scmp.eq.s32.totalorder %s26, 0
      %p65 = por %p63, %p64
      %s66 = ssub.s32 %s28, %s35
      %p67 = scmp.eq.s32.totalorder %s66, 0
      %s69 = sadd.s32 %s68, 1
      %s70 = scalar_select %p67, %s68, %s69
      %p73 = pneg %p67
      %p74 = scmp.eq.s32.totalorder %s20, 3
      %p75 = por %p73, %p74
      %p76 = scmp.ne.s32.totalorder %s68, %s71
      %p77 = scmp.eq.s32.totalorder %s20, 0
      %p78 = por %p76, %p77
      %p79 = scmp.ne.s32.totalorder %s68, %s71
      %p80 = scmp.eq.s32.totalorder %s25, 3
      %p81 = por %p79, %p80
      %p82 = scmp.ne.s32.totalorder %s71, %s72
      %p83 = scmp.eq.s32.totalorder %s25, 0
      %p84 = por %p82, %p83
      %p85 = scmp.ne.s32.totalorder %s71, %s72
      %p86 = scmp.eq.s32.totalorder %s26, 3
      %p87 = por %p85, %p86
      %p89 = scmp.ne.s32.totalorder %s72, %s88
      %p90 = scmp.eq.s32.totalorder %s26, 0
      %p91 = por %p89, %p90
      %s92 = ssub.s32 %s28, %s35
      %p93 = scmp.eq.s32.totalorder %s92, 0
      %s95 = sadd.s32 %s94, 1
      %s96 = scalar_select %p93, %s94, %s95
      %p99 = pneg %p93
      %p100 = scmp.eq.s32.totalorder %s20, 3
      %p101 = por %p99, %p100
      %p102 = scmp.ne.s32.totalorder %s94, %s97
      %p103 = scmp.eq.s32.totalorder %s20, 0
      %p104 = por %p102, %p103
      %p105 = scmp.ne.s32.totalorder %s94, %s97
      %p106 = scmp.eq.s32.totalorder %s25, 3
      %p107 = por %p105, %p106
      %p108 = scmp.ne.s32.totalorder %s97, %s98
      %p109 = scmp.eq.s32.totalorder %s25, 0
      %p110 = por %p108, %p109
      %p111 = scmp.ne.s32.totalorder %s97, %s98
      %p112 = scmp.eq.s32.totalorder %s26, 3
      %p113 = por %p111, %p112
      %p115 = scmp.ne.s32.totalorder %s98, %s114
      %p116 = scmp.eq.s32.totalorder %s26, 0
      %p117 = por %p115, %p116
      %s118 = ssub.s32 %s28, %s35
      %p119 = scmp.eq.s32.totalorder %s118, 0
      %s121 = sadd.s32 %s120, 1
      %s122 = scalar_select %p119, %s120, %s121
      %p125 = pneg %p119
      %p126 = scmp.eq.s32.totalorder %s20, 3
      %p127 = por %p125, %p126
      %p128 = scmp.ne.s32.totalorder %s120, %s123
      %p129 = scmp.eq.s32.totalorder %s20, 0
      %p130 = por %p128, %p129
      %p131 = scmp.ne.s32.totalorder %s120, %s123
      %p132 = scmp.eq.s32.totalorder %s25, 3
      %p133 = por %p131, %p132
      %p134 = scmp.ne.s32.totalorder %s123, %s124
      %p135 = scmp.eq.s32.totalorder %s25, 0
      %p136 = por %p134, %p135
      %p137 = scmp.ne.s32.totalorder %s123, %s124
      %p138 = scmp.eq.s32.totalorder %s26, 3
      %p139 = por %p137, %p138
      %p141 = scmp.ne.s32.totalorder %s124, %s140
      %p142 = scmp.eq.s32.totalorder %s26, 0
      %p143 = por %p141, %p142
      %s145 = sadd.s32 %s144, 1
      %p148 = scmp.eq.s32.totalorder %s20, 3
      %p149 = scmp.ne.s32.totalorder %s144, %s146
      %p150 = scmp.eq.s32.totalorder %s20, 0
      %p151 = por %p149, %p150
      %p152 = scmp.ne.s32.totalorder %s144, %s146
      %p153 = scmp.eq.s32.totalorder %s25, 3
      %p154 = por %p152, %p153
      %p155 = scmp.ne.s32.totalorder %s146, %s147
      %p156 = scmp.eq.s32.totalorder %s25, 0
      %p157 = por %p155, %p156
      %p158 = scmp.ne.s32.totalorder %s146, %s147
      %p159 = scmp.eq.s32.totalorder %s26, 3
      %p160 = por %p158, %p159
      %p162 = scmp.ne.s32.totalorder %s147, %s161
      %p163 = scmp.eq.s32.totalorder %s26, 0
      %p164 = por %p162, %p163
      %s165 = ssub.s32 %s27, %s39
      %p166 = scmp.eq.s32.totalorder %s165, 0
      %s168 = sadd.s32 %s167, 1
      %s169 = scalar_select %p166, %s167, %s168
      %p172 = pneg %p166
      %p173 = scmp.eq.s32.totalorder %s20, 3
      %p174 = por %p172, %p173
      %p175 = scmp.ne.s32.totalorder %s167, %s170
      %p176 = scmp.eq.s32.totalorder %s20, 0
      %p177 = por %p175, %p176
      %p178 = scmp.ne.s32.totalorder %s167, %s170
      %p179 = scmp.eq.s32.totalorder %s25, 3
      %p180 = por %p178, %p179
      %p181 = scmp.ne.s32.totalorder %s170, %s171
      %p182 = scmp.eq.s32.totalorder %s25, 0
      %p183 = por %p181, %p182
      %p184 = scmp.ne.s32.totalorder %s170, %s171
      %p185 = scmp.eq.s32.totalorder %s26, 3
      %p186 = por %p184, %p185
      %p188 = scmp.ne.s32.totalorder %s171, %s187
      %p189 = scmp.eq.s32.totalorder %s26, 0
      %p190 = por %p188, %p189
      %p191 = scmp.le.s32.totalorder 1, %s20
      %p192 = scmp.lt.s32.totalorder %s20, 5
      %p193 = pnand %p191, %p192
      %p194 = pneg %p193
      // Predicated region
      $region9: #{tpu_custom_call.1} parent=5 // pred_check
        _
      $region10: #{tpu_custom_call.1} parent=5 // pred_check_branch
        %196 = sbr.rel (%p193) target = $region12
      $region11: #{tpu_custom_call.1} parent=5 // pred_region
        %s197 = ssub.s32 %s20, 1
        // Predicated region
        $region13: #{tpu_custom_call.1} parent=11 // pred_check
          %p198 = pneg %p157
        $region14: #{tpu_custom_call.1} parent=11 // pred_check_branch
          %200 = sbr.rel (%p198) target = $region16
        $region15: #{tpu_custom_call.1} parent=11 // pred_region
          _
        $region16: #{tpu_custom_call.1} parent=11 // pred_fallthru
          _
      $region12: #{tpu_custom_call.1} parent=5 // pred_fallthru
        _
      %p201 = scmp.lt.s32.totalorder %s20, 4
      // Predicated region
      $region17: #{tpu_custom_call.1} parent=5 // pred_check
        %p202 = pneg %p201
      $region18: #{tpu_custom_call.1} parent=5 // pred_check_branch
        %204 = sbr.rel (%p202) target = $region20
      $region19: #{tpu_custom_call.1} parent=5 // pred_region
        // Predicated region
        $region21: #{tpu_custom_call.1} parent=19 // pred_check
          %p205 = pneg %p52
        $region22: #{tpu_custom_call.1} parent=19 // pred_check_branch
          %207 = sbr.rel (%p205) target = $region24
        $region23: #{tpu_custom_call.1} parent=19 // pred_region
          %s208 = sand.u32 %s42, 1
          %s209 = scalar_lea.sflag [#allocation4], %s208
          %s210 = sand.u32 %s42, 1
          %s211 = smul.addr %s210, 64
          %s212 = scalar_lea.vmem [#allocation3], %s211
          %s213 = smul.u32 8, %s27
          %s215 = ssub.s32 1024, 1024
          %216 = vsyncadd %s209, %s215
          %s217 = smul.addr %s213, 128
          %s218 = scalar_lea.hbm %s0, %s217
          %s219 = sshll.u32 %s212, 4
          %s220 = int_to_ptr.vmem [resolvable:$true] %s219
          %225 = dma.hbm_to_vmem [thread:$0]  %s218, 1024, %s220, %s209, 128, 128, 8
        $region24: #{tpu_custom_call.1} parent=19 // pred_fallthru
          _
        // Predicated region
        $region25: #{tpu_custom_call.1} parent=19 // pred_check
          %p226 = pneg %p78
        $region26: #{tpu_custom_call.1} parent=19 // pred_check_branch
          %228 = sbr.rel (%p226) target = $region28
        $region27: #{tpu_custom_call.1} parent=19 // pred_region
          %s229 = sand.u32 %s20, 1
          %s230 = scalar_lea.sflag [#allocation7], %s229
          %s231 = sand.u32 %s68, 1
          %s232 = smul.addr %s231, 64
          %s233 = scalar_lea.vmem [#allocation6], %s232
          %s235 = ssub.s32 1024, 1024
          %236 = vsyncadd %s230, %s235
          %s237 = smul.addr %s28, 64
          %s238 = scalar_lea.hbm %s1, %s237
          %s239 = sshll.u32 %s233, 4
          %s240 = int_to_ptr.vmem [resolvable:$true] %s239
          %245 = dma.hbm_to_vmem [thread:$0]  %s238, 1024, %s240, %s230, 128, 64, 4
        $region28: #{tpu_custom_call.1} parent=19 // pred_fallthru
          _
        // Predicated region
        $region29: #{tpu_custom_call.1} parent=19 // pred_check
          %p246 = pneg %p104
        $region30: #{tpu_custom_call.1} parent=19 // pred_check_branch
          %248 = sbr.rel (%p246) target = $region32
        $region31: #{tpu_custom_call.1} parent=19 // pred_region
          %p249 = scmp.lt.s32.totalorder %s28, 1
          %s250 = scalar_select %p249, %s28, 1
          %s251 = scalar_lea.vmem %s2, %s250
        $region32: #{tpu_custom_call.1} parent=19 // pred_fallthru
          _
        // Predicated region
        $region33: #{tpu_custom_call.1} parent=19 // pred_check
          %p252 = pneg %p130
        $region34: #{tpu_custom_call.1} parent=19 // pred_check_branch
          %254 = sbr.rel (%p252) target = $region36
        $region35: #{tpu_custom_call.1} parent=19 // pred_region
          %s255 = sand.u32 %s20, 1
          %s256 = scalar_lea.sflag [#allocation7], %s255
          %s257 = sand.u32 %s120, 1
          %s258 = smul.addr %s257, 64
          %s259 = scalar_lea.vmem [#allocation8], %s258
          %s260 = smul.u32 16, %s28
          %s262 = ssub.s32 1024, 1024
          %263 = vsyncadd %s256, %s262
          %s264 = smul.addr %s260, 64
          %s265 = scalar_lea.hbm %s3, %s264
          %s266 = sshll.u32 %s259, 4
          %s267 = int_to_ptr.vmem [resolvable:$true] %s266
          %272 = dma.hbm_to_vmem [thread:$0]  %s265, 1024, %s267, %s256, 64, 64, 4
        $region36: #{tpu_custom_call.1} parent=19 // pred_fallthru
          _
      $region20: #{tpu_custom_call.1} parent=5 // pred_fallthru
        _
      %p273 = scmp.le.s32.totalorder 1, %s20
      %p274 = scmp.lt.s32.totalorder %s20, 5
      %p275 = pnand %p273, %p274
      %p276 = pneg %p275
      // Predicated region
      $region37: #{tpu_custom_call.1} parent=5 // pred_check
        _
      $region38: #{tpu_custom_call.1} parent=5 // pred_check_branch
        %278 = sbr.rel (%p275) target = $region40
      $region39: #{tpu_custom_call.1} parent=5 // pred_region
        %s279 = ssub.s32 %s20, 1
        %s280 = sand.u32 %s45, 1
        %s281 = scalar_lea.sflag [#allocation4], %s280
        %s282 = sand.u32 %s45, 1
        %s283 = smul.addr %s282, 64
        %s284 = scalar_lea.vmem [#allocation3], %s283
        // Predicated region
        $region41: #{tpu_custom_call.1} parent=39 // pred_check
          %p285 = pneg %p58
        $region42: #{tpu_custom_call.1} parent=39 // pred_check_branch
          %287 = sbr.rel (%p285) target = $region44
        $region43: #{tpu_custom_call.1} parent=39 // pred_region
          %288 = dma.done %s281, 1024
        $region44: #{tpu_custom_call.1} parent=39 // pred_fallthru
          _
        %s289 = sand.u32 %s25, 1
        %s290 = scalar_lea.sflag [#allocation7], %s289
        %s291 = sand.u32 %s71, 1
        %s292 = smul.addr %s291, 64
        %s293 = scalar_lea.vmem [#allocation6], %s292
        // Predicated region
        $region45: #{tpu_custom_call.1} parent=39 // pred_check
          %p294 = pneg %p84
        $region46: #{tpu_custom_call.1} parent=39 // pred_check_branch
          %296 = sbr.rel (%p294) target = $region48
        $region47: #{tpu_custom_call.1} parent=39 // pred_region
          %297 = dma.done %s290, 1024
        $region48: #{tpu_custom_call.1} parent=39 // pred_fallthru
          _
        %s298 = sand.u32 %s25, 1
        %s299 = scalar_lea.sflag [#allocation7], %s298
        %s300 = sand.u32 %s123, 1
        %s301 = smul.addr %s300, 64
        %s302 = scalar_lea.vmem [#allocation8], %s301
        // Predicated region
        $region49: #{tpu_custom_call.1} parent=39 // pred_check
          %p303 = pneg %p136
        $region50: #{tpu_custom_call.1} parent=39 // pred_check_branch
          %305 = sbr.rel (%p303) target = $region52
        $region51: #{tpu_custom_call.1} parent=39 // pred_region
          %306 = dma.done %s299, 1024
        $region52: #{tpu_custom_call.1} parent=39 // pred_fallthru
          _
        %s307 = sand.u32 %s45, 1
        %s308 = scalar_lea.sflag [#allocation4], %s307
        %s309 = sand.u32 %s45, 1
        %s310 = smul.addr %s309, 64
        %s311 = scalar_lea.vmem [#allocation3], %s310
        %p312 = pneg %p58
        %p313 = pneg %p55
        %s314 = sand.u32 %s25, 1
        %s315 = scalar_lea.sflag [#allocation7], %s314
        %s316 = sand.u32 %s71, 1
        %s317 = smul.addr %s316, 64
        %s318 = scalar_lea.vmem [#allocation6], %s317
        %p319 = pneg %p84
        %p320 = pneg %p81
        %p321 = scmp.lt.s32.totalorder %s30, 1
        %s322 = scalar_select %p321, %s30, 1
        %s323 = scalar_lea.vmem %s2, %s322
        %p324 = pneg %p110
        %p325 = pneg %p107
        %s326 = sand.u32 %s25, 1
        %s327 = scalar_lea.sflag [#allocation7], %s326
        %s328 = sand.u32 %s123, 1
        %s329 = smul.addr %s328, 64
        %s330 = scalar_lea.vmem [#allocation8], %s329
        %p331 = pneg %p136
        %p332 = pneg %p133
        %p333 = pneg %p157
        %p334 = pneg %p154
        %p335 = pneg %p183
        %p336 = pneg %p180
        %s337 = sand.u32 %s170, 1
        %s338 = scalar_lea.sflag [#allocation5], %s337
        %s339 = sand.u32 %s170, 1
        %s340 = smul.addr %s339, 64
        %s341 = scalar_lea.vmem [#allocation9], %s340
        %s342 = smul.u32 8, %s29
        %p343 = scmp.lt.s32.totalorder %s30, 1
        %s344 = scalar_select %p343, %s30, 1
        %s345 = scalar_lea.vmem %s2, %s344
        %s346 = smul.u32 16, %s30
        %s347 = smul.u32 8, %s29
        %p349 = scmp.eq.s32.totalorder %s30, 0
        // Predicated region
        $region53: #{tpu_custom_call.1} parent=39 // pred_check
          %p350 = pneg %p349
        $region54: #{tpu_custom_call.1} parent=39 // pred_check_branch
          %352 = sbr.rel (%p350) target = $region56
        $region55: #{tpu_custom_call.1} parent=39 // pred_region
          %353 = vst [vmem:[#allocation2] sm:$0xff] 0.0
          %354 = vst [vmem:[#allocation2 + $0x8] sm:$0xff] 0.0
          %355 = vst [vmem:[#allocation2 + $0x10] sm:$0xff] 0.0
          %356 = vst [vmem:[#allocation2 + $0x18] sm:$0xff] 0.0
          %357 = vst [vmem:[#allocation2 + $0x20] sm:$0xff] 0.0
          %358 = vst [vmem:[#allocation2 + $0x28] sm:$0xff] 0.0
          %359 = vst [vmem:[#allocation2 + $0x30] sm:$0xff] 0.0
          %360 = vst [vmem:[#allocation2 + $0x38] sm:$0xff] 0.0
        $region56: #{tpu_custom_call.1} parent=39 // pred_fallthru
          _
        %v361 = vld [vmem:[%s284] sm:$0xff]
        %v362 = vld [vmem:[%s284 + $0x8] sm:$0xff]
        %v363 = vld [vmem:[%s284 + $0x10] sm:$0xff]
        %v364 = vld [vmem:[%s284 + $0x18] sm:$0xff]
        %v365 = vld [vmem:[%s284 + $0x20] sm:$0xff]
        %v366 = vld [vmem:[%s284 + $0x28] sm:$0xff]
        %v367 = vld [vmem:[%s284 + $0x30] sm:$0xff]
        %v368 = vld [vmem:[%s284 + $0x38] sm:$0xff]
        %v369 = vpack.c.bf16 %v362, %v361
        %v370 = vpack.c.bf16 %v364, %v363
        %v371 = vpack.c.bf16 %v366, %v365
        %v372 = vpack.c.bf16 %v368, %v367
        %v373 = vld [vmem:[%s293] sm:$0xf]
        %v374 = vld [vmem:[%s293 + $0x4] sm:$0xf]
        %v375 = vld [vmem:[%s293 + $0x8] sm:$0xf]
        %v376 = vld [vmem:[%s293 + $0xc] sm:$0xf]
        %v377 = vld [vmem:[%s293 + $0x10] sm:$0xf]
        %v378 = vld [vmem:[%s293 + $0x14] sm:$0xf]
        %v379 = vld [vmem:[%s293 + $0x18] sm:$0xf]
        %v380 = vld [vmem:[%s293 + $0x1c] sm:$0xf]
        %v381 = vld [vmem:[%s293 + $0x20] sm:$0xf]
        %v382 = vld [vmem:[%s293 + $0x24] sm:$0xf]
        %v383 = vld [vmem:[%s293 + $0x28] sm:$0xf]
        %v384 = vld [vmem:[%s293 + $0x2c] sm:$0xf]
        %v385 = vld [vmem:[%s293 + $0x30] sm:$0xf]
        %v386 = vld [vmem:[%s293 + $0x34] sm:$0xf]
        %v387 = vld [vmem:[%s293 + $0x38] sm:$0xf]
        %v388 = vld [vmem:[%s293 + $0x3c] sm:$0xf]
        %v389 = vld [vmem:[%s345] sm:$0x1]
        %v391 = vlaneseq
        %v392 = vshrl.u32 %v391, 7
        %v393 = vsub.s32 0, %v392
        %v394 = vrot.slane %v389, %v393
        %v412 = vunpack.c.l.b16 %v373
        %v413 = vunpack.c.l.b16 %v374
        %v414 = vunpack.c.l.b16 %v375
        %v415 = vunpack.c.l.b16 %v376
        %v416 = vunpack.c.l.b16 %v377
        %v417 = vunpack.c.l.b16 %v378
        %v418 = vunpack.c.l.b16 %v379
        %v419 = vunpack.c.l.b16 %v380
        %v420 = vunpack.c.l.b16 %v381
        %v421 = vunpack.c.l.b16 %v382
        %v422 = vunpack.c.l.b16 %v383
        %v423 = vunpack.c.l.b16 %v384
        %v424 = vunpack.c.l.b16 %v385
        %v425 = vunpack.c.l.b16 %v386
        %v426 = vunpack.c.l.b16 %v387
        %v427 = vunpack.c.l.b16 %v388
        %v428 = vpack.c.b16 %v413, %v412
        %v429 = vpack.c.b16 %v415, %v414
        %v430 = vpack.c.b16 %v417, %v416
        %v431 = vpack.c.b16 %v419, %v418
        %v432 = vpack.c.b16 %v421, %v420
        %v433 = vpack.c.b16 %v423, %v422
        %v434 = vpack.c.b16 %v425, %v424
        %v435 = vpack.c.b16 %v427, %v426
        %444 = vmatprep.subr.bf16.mxu0 0
        %445 = vmatpush1.bf16.msra.mxu0 %v428
        %446 = vmatprep.subr.bf16.mxu0 0
        %447 = vmatpush1.bf16.msra.mxu0 %v429
        %448 = vmatprep.subr.bf16.mxu0 0
        %449 = vmatpush1.bf16.msra.mxu0 %v430
        %450 = vmatprep.subr.bf16.mxu0 0
        %451 = vmatpush1.bf16.msra.mxu0 %v431
        %452 = vmatprep.subr.bf16.mxu0 0
        %453 = vmatpush1.bf16.msra.mxu0 %v432
        %454 = vmatprep.subr.bf16.mxu0 0
        %455 = vmatpush1.bf16.msra.mxu0 %v433
        %456 = vmatprep.subr.bf16.mxu0 0
        %457 = vmatpush1.bf16.msra.mxu0 %v434
        %458 = vmatprep.subr.bf16.mxu0 0
        %459 = vmatpush1.bf16.msra.mxu0 %v435
        %460 = vmatprep.subr.bf16.mxu0 0
        %461 = vmatpush1.bf16.msra.mxu0 0
        %462 = vmatprep.subr.bf16.mxu0 0
        %463 = vmatpush1.bf16.msra.mxu0 0
        %464 = vmatprep.subr.bf16.mxu0 0
        %465 = vmatpush1.bf16.msra.mxu0 0
        %466 = vmatprep.subr.bf16.mxu0 0
        %467 = vmatpush1.bf16.msra.mxu0 0
        %468 = vmatprep.subr.bf16.mxu0 0
        %469 = vmatpush1.bf16.msra.mxu0 0
        %470 = vmatprep.subr.bf16.mxu0 0
        %471 = vmatpush1.bf16.msra.mxu0 0
        %472 = vmatprep.subr.bf16.mxu0 0
        %473 = vmatpush1.bf16.msra.mxu0 0
        %474 = vmatprep.subr.bf16.mxu0 0
        %475 = vmatpush1.bf16.msra.mxu0 0
        %476 = vmatprep.mubr.bf16.mxu0 0
        %477 = vmatmul.mubr.bf16.gmra.mrb[0].mxu0 %v369
        %v478 = vpop.f32.mrb[0].mxu0
        %v479 = vadd.f32 %v394, %v478
        %v480 = vpop.f32.mrb[0].mxu0
        %v481 = vpop.f32.mrb[0].mxu0
        %v482 = vadd.f32 %v394, %v481
        %v483 = vpop.f32.mrb[0].mxu0
        %484 = vmatprep.mubr.bf16.mxu0 0
        %485 = vmatmul.mubr.bf16.gmra.mrb[0].mxu0 %v370
        %v486 = vpop.f32.mrb[0].mxu0
        %v487 = vadd.f32 %v394, %v486
        %v488 = vpop.f32.mrb[0].mxu0
        %v489 = vpop.f32.mrb[0].mxu0
        %v490 = vadd.f32 %v394, %v489
        %v491 = vpop.f32.mrb[0].mxu0
        %492 = vmatprep.mubr.bf16.mxu0 0
        %493 = vmatmul.mubr.bf16.gmra.mrb[0].mxu0 %v371
        %v494 = vpop.f32.mrb[0].mxu0
        %v495 = vadd.f32 %v394, %v494
        %v496 = vpop.f32.mrb[0].mxu0
        %v497 = vpop.f32.mrb[0].mxu0
        %v498 = vadd.f32 %v394, %v497
        %v499 = vpop.f32.mrb[0].mxu0
        %500 = vmatprep.mubr.bf16.mxu0 0
        %501 = vmatmul.mubr.bf16.gmra.mrb[0].mxu0 %v372
        %v502 = vpop.f32.mrb[0].mxu0
        %v503 = vadd.f32 %v394, %v502
        %v504 = vpop.f32.mrb[0].mxu0
        %v505 = vpop.f32.mrb[0].mxu0
        %v506 = vadd.f32 %v394, %v505
        %v507 = vpop.f32.mrb[0].mxu0
        %508 = vdwg.mxu0
        %v509 = vmul.f32 %v479, 0.5
        %v510 = vmul.f32 %v482, 0.5
        %v511 = vmul.f32 %v487, 0.5
        %v512 = vmul.f32 %v490, 0.5
        %v513 = vmul.f32 %v495, 0.5
        %v514 = vmul.f32 %v498, 0.5
        %v515 = vmul.f32 %v503, 0.5
        %v516 = vmul.f32 %v506, 0.5
        %v517 = vmul.f32 %v479, %v479
        %v518 = vmul.f32 %v482, %v482
        %v519 = vmul.f32 %v487, %v487
        %v520 = vmul.f32 %v490, %v490
        %v521 = vmul.f32 %v495, %v495
        %v522 = vmul.f32 %v498, %v498
        %v523 = vmul.f32 %v503, %v503
        %v524 = vmul.f32 %v506, %v506
        %v525 = vmul.f32 %v517, %v479
        %v526 = vmul.f32 %v518, %v482
        %v527 = vmul.f32 %v519, %v487
        %v528 = vmul.f32 %v520, %v490
        %v529 = vmul.f32 %v521, %v495
        %v530 = vmul.f32 %v522, %v498
        %v531 = vmul.f32 %v523, %v503
        %v532 = vmul.f32 %v524, %v506
        %v533 = vmul.f32 %v525, 0.044715
        %v534 = vmul.f32 %v526, 0.044715
        %v535 = vmul.f32 %v527, 0.044715
        %v536 = vmul.f32 %v528, 0.044715
        %v537 = vmul.f32 %v529, 0.044715
        %v538 = vmul.f32 %v530, 0.044715
        %v539 = vmul.f32 %v531, 0.044715
        %v540 = vmul.f32 %v532, 0.044715
        %v541 = vadd.f32 %v479, %v533
        %v542 = vadd.f32 %v482, %v534
        %v543 = vadd.f32 %v487, %v535
        %v544 = vadd.f32 %v490, %v536
        %v545 = vadd.f32 %v495, %v537
        %v546 = vadd.f32 %v498, %v538
        %v547 = vadd.f32 %v503, %v539
        %v548 = vadd.f32 %v506, %v540
        %v549 = vmul.f32 %v541, 0.7978846
        %v550 = vmul.f32 %v542, 0.7978846
        %v551 = vmul.f32 %v543, 0.7978846
        %v552 = vmul.f32 %v544, 0.7978846
        %v553 = vmul.f32 %v545, 0.7978846
        %v554 = vmul.f32 %v546, 0.7978846
        %v555 = vmul.f32 %v547, 0.7978846
        %v556 = vmul.f32 %v548, 0.7978846
        %v557 = vtanh.pop %v549
        %v558 = vtanh.pop %v550
        %v559 = vtanh.pop %v551
        %v560 = vtanh.pop %v552
        %v561 = vtanh.pop %v553
        %v562 = vtanh.pop %v554
        %v563 = vtanh.pop %v555
        %v564 = vtanh.pop %v556
        %v565 = vadd.f32 %v557, 1.0
        %v566 = vadd.f32 %v558, 1.0
        %v567 = vadd.f32 %v559, 1.0
        %v568 = vadd.f32 %v560, 1.0
        %v569 = vadd.f32 %v561, 1.0
        %v570 = vadd.f32 %v562, 1.0
        %v571 = vadd.f32 %v563, 1.0
        %v572 = vadd.f32 %v564, 1.0
        %v573 = vmul.f32 %v509, %v565
        %v574 = vmul.f32 %v510, %v566
        %v575 = vmul.f32 %v511, %v567
        %v576 = vmul.f32 %v512, %v568
        %v577 = vmul.f32 %v513, %v569
        %v578 = vmul.f32 %v514, %v570
        %v579 = vmul.f32 %v515, %v571
        %v580 = vmul.f32 %v516, %v572
        %v581 = vld [vmem:[#allocation2] sm:$0xff]
        %v582 = vld [vmem:[#allocation2 + $0x8] sm:$0xff]
        %v583 = vld [vmem:[#allocation2 + $0x10] sm:$0xff]
        %v584 = vld [vmem:[#allocation2 + $0x18] sm:$0xff]
        %v585 = vld [vmem:[#allocation2 + $0x20] sm:$0xff]
        %v586 = vld [vmem:[#allocation2 + $0x28] sm:$0xff]
        %v587 = vld [vmem:[#allocation2 + $0x30] sm:$0xff]
        %v588 = vld [vmem:[#allocation2 + $0x38] sm:$0xff]
        %v589 = vpack.c.bf16 %v574, %v573
        %v590 = vpack.c.bf16 %v576, %v575
        %v591 = vpack.c.bf16 %v578, %v577
        %v592 = vpack.c.bf16 %v580, %v579
        %v593 = vld [vmem:[%s302] sm:$0xf]
        %v594 = vld [vmem:[%s302 + $0x4] sm:$0xf]
        %v595 = vld [vmem:[%s302 + $0x8] sm:$0xf]
        %v596 = vld [vmem:[%s302 + $0xc] sm:$0xf]
        %v597 = vld [vmem:[%s302 + $0x10] sm:$0xf]
        %v598 = vld [vmem:[%s302 + $0x14] sm:$0xf]
        %v599 = vld [vmem:[%s302 + $0x18] sm:$0xf]
        %v600 = vld [vmem:[%s302 + $0x1c] sm:$0xf]
        %v601 = vld [vmem:[%s302 + $0x20] sm:$0xf]
        %v602 = vld [vmem:[%s302 + $0x24] sm:$0xf]
        %v603 = vld [vmem:[%s302 + $0x28] sm:$0xf]
        %v604 = vld [vmem:[%s302 + $0x2c] sm:$0xf]
        %v605 = vld [vmem:[%s302 + $0x30] sm:$0xf]
        %v606 = vld [vmem:[%s302 + $0x34] sm:$0xf]
        %v607 = vld [vmem:[%s302 + $0x38] sm:$0xf]
        %v608 = vld [vmem:[%s302 + $0x3c] sm:$0xf]
        %v625 = vunpack.c.l.b16 %v593
        %v626 = vunpack.c.l.b16 %v594
        %v627 = vunpack.c.l.b16 %v595
        %v628 = vunpack.c.l.b16 %v596
        %v629 = vunpack.c.l.b16 %v597
        %v630 = vunpack.c.l.b16 %v598
        %v631 = vunpack.c.l.b16 %v599
        %v632 = vunpack.c.l.b16 %v600
        %v633 = vunpack.c.l.b16 %v601
        %v634 = vunpack.c.l.b16 %v602
        %v635 = vunpack.c.l.b16 %v603
        %v636 = vunpack.c.l.b16 %v604
        %v637 = vunpack.c.l.b16 %v605
        %v638 = vunpack.c.l.b16 %v606
        %v639 = vunpack.c.l.b16 %v607
        %v640 = vunpack.c.l.b16 %v608
        %v641 = vpack.c.b16 %v626, %v625
        %v642 = vpack.c.b16 %v628, %v627
        %v643 = vpack.c.b16 %v630, %v629
        %v644 = vpack.c.b16 %v632, %v631
        %v645 = vpack.c.b16 %v634, %v633
        %v646 = vpack.c.b16 %v636, %v635
        %v647 = vpack.c.b16 %v638, %v637
        %v648 = vpack.c.b16 %v640, %v639
        %657 = vmatprep.subr.bf16.mxu0 0
        %658 = vmatpush1.bf16.msra.mxu0 %v641
        %659 = vmatprep.subr.bf16.mxu0 0
        %660 = vmatpush1.bf16.msra.mxu0 %v642
        %661 = vmatprep.subr.bf16.mxu0 0
        %662 = vmatpush1.bf16.msra.mxu0 %v643
        %663 = vmatprep.subr.bf16.mxu0 0
        %664 = vmatpush1.bf16.msra.mxu0 %v644
        %665 = vmatprep.subr.bf16.mxu0 0
        %666 = vmatpush1.bf16.msra.mxu0 %v645
        %667 = vmatprep.subr.bf16.mxu0 0
        %668 = vmatpush1.bf16.msra.mxu0 %v646
        %669 = vmatprep.subr.bf16.mxu0 0
        %670 = vmatpush1.bf16.msra.mxu0 %v647
        %671 = vmatprep.subr.bf16.mxu0 0
        %672 = vmatpush1.bf16.msra.mxu0 %v648
        %673 = vmatprep.subr.bf16.mxu0 0
        %674 = vmatpush1.bf16.msra.mxu0 0
        %675 = vmatprep.subr.bf16.mxu0 0
        %676 = vmatpush1.bf16.msra.mxu0 0
        %677 = vmatprep.subr.bf16.mxu0 0
        %678 = vmatpush1.bf16.msra.mxu0 0
        %679 = vmatprep.subr.bf16.mxu0 0
        %680 = vmatpush1.bf16.msra.mxu0 0
        %681 = vmatprep.subr.bf16.mxu0 0
        %682 = vmatpush1.bf16.msra.mxu0 0
        %683 = vmatprep.subr.bf16.mxu0 0
        %684 = vmatpush1.bf16.msra.mxu0 0
        %685 = vmatprep.subr.bf16.mxu0 0
        %686 = vmatpush1.bf16.msra.mxu0 0
        %687 = vmatprep.subr.bf16.mxu0 0
        %688 = vmatpush1.bf16.msra.mxu0 0
        %689 = vmatprep.mubr.bf16.mxu0 0
        %690 = vmatmul.mubr.bf16.gmra.mrb[0].mxu0 %v589
        %v691 = vpop.f32.mrb[0].mxu0
        %v692 = vadd.f32 0.0, %v691
        %v693 = vpop.f32.mrb[0].mxu0
        %v694 = vpop.f32.mrb[0].mxu0
        %v695 = vadd.f32 0.0, %v694
        %v696 = vpop.f32.mrb[0].mxu0
        %697 = vmatprep.mubr.bf16.mxu0 0
        %698 = vmatmul.mubr.bf16.gmra.mrb[0].mxu0 %v590
        %v699 = vpop.f32.mrb[0].mxu0
        %v700 = vadd.f32 0.0, %v699
        %v701 = vpop.f32.mrb[0].mxu0
        %v702 = vpop.f32.mrb[0].mxu0
        %v703 = vadd.f32 0.0, %v702
        %v704 = vpop.f32.mrb[0].mxu0
        %705 = vmatprep.mubr.bf16.mxu0 0
        %706 = vmatmul.mubr.bf16.gmra.mrb[0].mxu0 %v591
        %v707 = vpop.f32.mrb[0].mxu0
        %v708 = vadd.f32 0.0, %v707
        %v709 = vpop.f32.mrb[0].mxu0
        %v710 = vpop.f32.mrb[0].mxu0
        %v711 = vadd.f32 0.0, %v710
        %v712 = vpop.f32.mrb[0].mxu0
        %713 = vmatprep.mubr.bf16.mxu0 0
        %714 = vmatmul.mubr.bf16.gmra.mrb[0].mxu0 %v592
        %v715 = vpop.f32.mrb[0].mxu0
        %v716 = vadd.f32 0.0, %v715
        %v717 = vpop.f32.mrb[0].mxu0
        %v718 = vpop.f32.mrb[0].mxu0
        %v719 = vadd.f32 0.0, %v718
        %v720 = vpop.f32.mrb[0].mxu0
        %721 = vdwg.mxu0
        %v722 = vadd.f32 %v581, %v692
        %v723 = vadd.f32 %v582, %v695
        %v724 = vadd.f32 %v583, %v700
        %v725 = vadd.f32 %v584, %v703
        %v726 = vadd.f32 %v585, %v708
        %v727 = vadd.f32 %v586, %v711
        %v728 = vadd.f32 %v587, %v716
        %v729 = vadd.f32 %v588, %v719
        %730 = vst [vmem:[#allocation2] sm:$0xff] %v722
        %731 = vst [vmem:[#allocation2 + $0x8] sm:$0xff] %v723
        %732 = vst [vmem:[#allocation2 + $0x10] sm:$0xff] %v724
        %733 = vst [vmem:[#allocation2 + $0x18] sm:$0xff] %v725
        %734 = vst [vmem:[#allocation2 + $0x20] sm:$0xff] %v726
        %735 = vst [vmem:[#allocation2 + $0x28] sm:$0xff] %v727
        %736 = vst [vmem:[#allocation2 + $0x30] sm:$0xff] %v728
        %737 = vst [vmem:[#allocation2 + $0x38] sm:$0xff] %v729
        %p738 = scmp.eq.s32.totalorder %s30, 1
        // Predicated region
        $region57: #{tpu_custom_call.1} parent=39 // pred_check
          %p739 = pneg %p738
        $region58: #{tpu_custom_call.1} parent=39 // pred_check_branch
          %741 = sbr.rel (%p739) target = $region60
        $region59: #{tpu_custom_call.1} parent=39 // pred_region
          %v742 = vld [vmem:[#allocation2] sm:$0xff]
          %v743 = vld [vmem:[#allocation2 + $0x8] sm:$0xff]
          %v744 = vld [vmem:[#allocation2 + $0x10] sm:$0xff]
          %v745 = vld [vmem:[#allocation2 + $0x18] sm:$0xff]
          %v746 = vld [vmem:[#allocation2 + $0x20] sm:$0xff]
          %v747 = vld [vmem:[#allocation2 + $0x28] sm:$0xff]
          %v748 = vld [vmem:[#allocation2 + $0x30] sm:$0xff]
          %v749 = vld [vmem:[#allocation2 + $0x38] sm:$0xff]
          %v750 = vld [vmem:[%s4] sm:$0x1]
          %v752 = vlaneseq
          %v753 = vshrl.u32 %v752, 7
          %v754 = vsub.s32 0, %v753
          %v755 = vrot.slane %v750, %v754
          %v757 = vadd.f32 %v742, %v755
          %v758 = vadd.f32 %v743, %v755
          %v759 = vadd.f32 %v744, %v755
          %v760 = vadd.f32 %v745, %v755
          %v761 = vadd.f32 %v746, %v755
          %v762 = vadd.f32 %v747, %v755
          %v763 = vadd.f32 %v748, %v755
          %v764 = vadd.f32 %v749, %v755
          %765 = vst [vmem:[%s341] sm:$0xff] %v757
          %766 = vst [vmem:[%s341 + $0x8] sm:$0xff] %v758
          %767 = vst [vmem:[%s341 + $0x10] sm:$0xff] %v759
          %768 = vst [vmem:[%s341 + $0x18] sm:$0xff] %v760
          %769 = vst [vmem:[%s341 + $0x20] sm:$0xff] %v761
          %770 = vst [vmem:[%s341 + $0x28] sm:$0xff] %v762
          %771 = vst [vmem:[%s341 + $0x30] sm:$0xff] %v763
          %772 = vst [vmem:[%s341 + $0x38] sm:$0xff] %v764
        $region60: #{tpu_custom_call.1} parent=39 // pred_fallthru
          _
        %s773 = sand.u32 %s170, 1
        %s774 = scalar_lea.sflag [#allocation5], %s773
        %s775 = sand.u32 %s170, 1
        %s776 = smul.addr %s775, 64
        %s777 = scalar_lea.vmem [#allocation9], %s776
        // Predicated region
        $region61: #{tpu_custom_call.1} parent=39 // pred_check
          %p778 = pneg %p180
        $region62: #{tpu_custom_call.1} parent=39 // pred_check_branch
          %780 = sbr.rel (%p778) target = $region64
        $region63: #{tpu_custom_call.1} parent=39 // pred_region
          %s781 = smul.u32 8, %s29
          %s783 = ssub.s32 1024, 1024
          %784 = vsyncadd %s774, %s783
          %s785 = smul.addr %s781, 128
          %s786 = scalar_lea.hbm %s5, %s785
          %s787 = sshll.u32 %s777, 4
          %s788 = int_to_ptr.vmem [resolvable:$true] %s787
          %793 = dma.vmem_to_hbm [thread:$0]  %s788, 1024, %s786, %s774, 128, 128, 8
        $region64: #{tpu_custom_call.1} parent=39 // pred_fallthru
          _
      $region40: #{tpu_custom_call.1} parent=5 // pred_fallthru
        _
      %p794 = scmp.le.s32.totalorder 2, %s20
      // Predicated region
      $region65: #{tpu_custom_call.1} parent=5 // pred_check
        %p795 = pneg %p794
      $region66: #{tpu_custom_call.1} parent=5 // pred_check_branch
        %797 = sbr.rel (%p795) target = $region68
      $region67: #{tpu_custom_call.1} parent=5 // pred_region
        %s798 = ssub.s32 %s20, 2
        // Predicated region
        $region69: #{tpu_custom_call.1} parent=67 // pred_check
          %p799 = pneg %p186
        $region70: #{tpu_custom_call.1} parent=67 // pred_check_branch
          %801 = sbr.rel (%p799) target = $region72
        $region71: #{tpu_custom_call.1} parent=67 // pred_region
          %s802 = sand.u32 %s171, 1
          %s803 = scalar_lea.sflag [#allocation5], %s802
          %s804 = sand.u32 %s171, 1
          %s805 = smul.addr %s804, 64
          %s806 = scalar_lea.vmem [#allocation9], %s805
          %807 = dma.done %s803, 1024
        $region72: #{tpu_custom_call.1} parent=67 // pred_fallthru
          _
      $region68: #{tpu_custom_call.1} parent=5 // pred_fallthru
        _
    $region6: #{tpu_custom_call.1} parent=1 // loop_footer
      %s24 = sadd.s32 1, %s20
    $region7: #{tpu_custom_call.1} parent=1 // loop_footer_branch
      %19 = sbr.rel target = $region3
    $region8: #{tpu_custom_call.1} parent=1 // loop_exit
      _
    %808 = vsyncpa [#allocation4], 1
    %s809 = scalar_lea.sflag [#allocation4], 1
    %810 = vsyncpa %s809, 1
    %811 = vsyncpa [#allocation7], 1
    %s812 = scalar_lea.sflag [#allocation7], 1
    %813 = vsyncpa %s812, 1
    %814 = vsyncpa [#allocation5], 1
    %s815 = scalar_lea.sflag [#allocation5], 1
    %816 = vsyncpa %s815, 1

// kernel: tpu_custom_call.1
$region0: #{tpu_custom_call.1}
  #allocation0 [shape = 'u32[]', space=smem, size = 0x4, offset = 0x4, fixed_abs, tag = 'smem constant byte address 0x4 - core index']
  #allocation1 [shape = 'u32[144,128]{1,0:T(1,128)}', space=vmem, size = 0x12000, scoped, tag = 'internal scratch']
  #allocation2 [shape = 'f32[64,128]{1,0:T(8,128)}', space=vmem, size = 0x8000, scoped, tag = 'scratch operand']
  %s0 = inlined_call_operand.hbm [shape: f32[128,128], index: 0, kind: input, shape index: {}]
  %s1 = inlined_call_operand.hbm [shape: bf16[128,256], index: 1, kind: input, shape index: {}]
  %s2 = inlined_call_operand.vmem [shape: f32[1,256], index: 2, kind: input, shape index: {}]
  %s3 = inlined_call_operand.hbm [shape: bf16[256,128], index: 3, kind: input, shape index: {}]
  %s4 = inlined_call_operand.vmem [shape: f32[1,128], index: 4, kind: input, shape index: {}]
  %s5 = inlined_call_operand.hbm [shape: f32[128,128], index: 5, kind: output, shape index: {}]
  %s6 = sld [smem:[#allocation0]]
  $region73: #{tpu_custom_call.1} parent=0
    _
  %s8 = ssub.s32 1, %s6
  %s9 = scalar_select 0, %s8, %s6
  $region1: #{tpu_custom_call.1} parent=0
    #allocation3 [shape = 'u8[65536]{0}', space=vmem, size = 0x10000, scoped, tag = 'input window, operand 0']
    #allocation4 [shape = 's32[2]{0}', space=sflag, size = 0x8, scoped, tag = 'scoped memory for tpu_custom_call.1']
    #allocation5 [shape = 's32[2]{0}', space=sflag, size = 0x8, scoped, tag = 'scoped memory for tpu_custom_call.1']
    #allocation6 [shape = 'u8[65536]{0}', space=vmem, size = 0x10000, scoped, tag = 'input window, operand 1']
    #allocation7 [shape = 's32[2]{0}', space=sflag, size = 0x8, scoped, tag = 'scoped memory for tpu_custom_call.1']
    #allocation8 [shape = 'u8[65536]{0}', space=vmem, size = 0x10000, scoped, tag = 'input window, operand 3']
    #allocation9 [shape = 'u8[65536]{0}', space=vmem, size = 0x10000, scoped, tag = 'output window, operand 0']
    %10 = vsyncpa [#allocation4], 0
    %s11 = scalar_lea.sflag [#allocation4], 1
    %12 = vsyncpa %s11, 0
    %13 = vsyncpa [#allocation7], 0
    %s14 = scalar_lea.sflag [#allocation7], 1
    %15 = vsyncpa %s14, 0
    %16 = vsyncpa [#allocation5], 0
    %s17 = scalar_lea.sflag [#allocation5], 1
    %18 = vsyncpa %s17, 0
    loop: start=0, step=1, limit=6
    $region2: #{tpu_custom_call.1} parent=1 // loop_pre_header
      _
    $region3: #{tpu_custom_call.1} parent=1 // loop_header
      %s20 = sphi 0, %s24
      %p21 = scmp.ge.s32.totalorder %s20, 6
      %s27 = sphi 0, %s39
      %s28 = sphi 0, %s35
      %s29 = sphi 0, %s27
      %s30 = sphi 0, %s28
      %s31 = sphi 0, %s29
      %s32 = sphi 0, %s30
      %s42 = sphi 0, %s44
      %s45 = sphi 0, %s42
      %s46 = sphi 0, %s45
      %s62 = sphi 0, %s46
      %s68 = sphi 0, %s70
      %s71 = sphi 0, %s68
      %s72 = sphi 0, %s71
      %s88 = sphi 0, %s72
      %s94 = sphi 0, %s96
      %s97 = sphi 0, %s94
      %s98 = sphi 0, %s97
      %s114 = sphi 0, %s98
      %s120 = sphi 0, %s122
      %s123 = sphi 0, %s120
      %s124 = sphi 0, %s123
      %s140 = sphi 0, %s124
      %s144 = sphi 0, %s144
      %s146 = sphi 0, %s144
      %s147 = sphi 0, %s146
      %s161 = sphi 0, %s147
      %s167 = sphi 0, %s169
      %s170 = sphi 0, %s167
      %s171 = sphi 0, %s170
      %s187 = sphi 0, %s171
    $region4: #{tpu_custom_call.1} parent=1 // loop_header_branch
      %23 = sbr.rel (%p21) target = $region8
    $region5: #{tpu_custom_call.1} parent=1 // loop_body
      %s25 = ssub.s32 %s20, 1
      %s26 = ssub.s32 %s20, 2
      %s33 = sadd.s32 1, %s28
      %p34 = scmp.ge.s32.totalorder %s33, 2
      %s35 = scalar_select %p34, 0, %s33
      %s36 = sadd.s32 1, %s27
      %s37 = scalar_select %p34, %s36, %s27
      %p38 = scmp.ge.s32.totalorder %s37, 2
      %s39 = scalar_select %p38, 0, %s37
      %s40 = ssub.s32 %s27, %s39
      %p41 = scmp.eq.s32.totalorder %s40, 0
      %s43 = sadd.s32 %s42, 1
      %s44 = scalar_select %p41, %s42, %s43
      %p47 = pneg %p41
      %p48 = scmp.eq.s32.totalorder %s20, 3
      %p49 = por %p47, %p48
      %p50 = scmp.ne.s32.totalorder %s42, %s45
      %p51 = scmp.eq.s32.totalorder %s20, 0
      %p52 = por %p50, %p51
      %p53 = scmp.ne.s32.totalorder %s42, %s45
      %p54 = scmp.eq.s32.totalorder %s25, 3
      %p55 = por %p53, %p54
      %p56 = scmp.ne.s32.totalorder %s45, %s46
      %p57 = scmp.eq.s32.totalorder %s25, 0
      %p58 = por %p56, %p57
      %p59 = scmp.ne.s32.totalorder %s45, %s46
      %p60 = scmp.eq.s32.totalorder %s26, 3
      %p61 = por %p59, %p60
      %p63 = scmp.ne.s32.totalorder %s46, %s62
      %p64 = scmp.eq.s32.totalorder %s26, 0
      %p65 = por %p63, %p64
      %s66 = ssub.s32 %s28, %s35
      %p67 = scmp.eq.s32.totalorder %s66, 0
      %s69 = sadd.s32 %s68, 1
      %s70 = scalar_select %p67, %s68, %s69
      %p73 = pneg %p67
      %p74 = scmp.eq.s32.totalorder %s20, 3
      %p75 = por %p73, %p74
      %p76 = scmp.ne.s32.totalorder %s68, %s71
      %p77 = scmp.eq.s32.totalorder %s20, 0
      %p78 = por %p76, %p77
      %p79 = scmp.ne.s32.totalorder %s68, %s71
      %p80 = scmp.eq.s32.totalorder %s25, 3
      %p81 = por %p79, %p80
      %p82 = scmp.ne.s32.totalorder %s71, %s72
      %p83 = scmp.eq.s32.totalorder %s25, 0
      %p84 = por %p82, %p83
      %p85 = scmp.ne.s32.totalorder %s71, %s72
      %p86 = scmp.eq.s32.totalorder %s26, 3
      %p87 = por %p85, %p86
      %p89 = scmp.ne.s32.totalorder %s72, %s88
      %p90 = scmp.eq.s32.totalorder %s26, 0
      %p91 = por %p89, %p90
      %s92 = ssub.s32 %s28, %s35
      %p93 = scmp.eq.s32.totalorder %s92, 0
      %s95 = sadd.s32 %s94, 1
      %s96 = scalar_select %p93, %s94, %s95
      %p99 = pneg %p93
      %p100 = scmp.eq.s32.totalorder %s20, 3
      %p101 = por %p99, %p100
      %p102 = scmp.ne.s32.totalorder %s94, %s97
      %p103 = scmp.eq.s32.totalorder %s20, 0
      %p104 = por %p102, %p103
      %p105 = scmp.ne.s32.totalorder %s94, %s97
      %p106 = scmp.eq.s32.totalorder %s25, 3
      %p107 = por %p105, %p106
      %p108 = scmp.ne.s32.totalorder %s97, %s98
      %p109 = scmp.eq.s32.totalorder %s25, 0
      %p110 = por %p108, %p109
      %p111 = scmp.ne.s32.totalorder %s97, %s98
      %p112 = scmp.eq.s32.totalorder %s26, 3
      %p113 = por %p111, %p112
      %p115 = scmp.ne.s32.totalorder %s98, %s114
      %p116 = scmp.eq.s32.totalorder %s26, 0
      %p117 = por %p115, %p116
      %s118 = ssub.s32 %s28, %s35
      %p119 = scmp.eq.s32.totalorder %s118, 0
      %s121 = sadd.s32 %s120, 1
      %s122 = scalar_select %p119, %s120, %s121
      %p125 = pneg %p119
      %p126 = scmp.eq.s32.totalorder %s20, 3
      %p127 = por %p125, %p126
      %p128 = scmp.ne.s32.totalorder %s120, %s123
      %p129 = scmp.eq.s32.totalorder %s20, 0
      %p130 = por %p128, %p129
      %p131 = scmp.ne.s32.totalorder %s120, %s123
      %p132 = scmp.eq.s32.totalorder %s25, 3
      %p133 = por %p131, %p132
      %p134 = scmp.ne.s32.totalorder %s123, %s124
      %p135 = scmp.eq.s32.totalorder %s25, 0
      %p136 = por %p134, %p135
      %p137 = scmp.ne.s32.totalorder %s123, %s124
      %p138 = scmp.eq.s32.totalorder %s26, 3
      %p139 = por %p137, %p138
      %p141 = scmp.ne.s32.totalorder %s124, %s140
      %p142 = scmp.eq.s32.totalorder %s26, 0
      %p143 = por %p141, %p142
      %s145 = sadd.s32 %s144, 1
      %p148 = scmp.eq.s32.totalorder %s20, 3
      %p149 = scmp.ne.s32.totalorder %s144, %s146
      %p150 = scmp.eq.s32.totalorder %s20, 0
      %p151 = por %p149, %p150
      %p152 = scmp.ne.s32.totalorder %s144, %s146
      %p153 = scmp.eq.s32.totalorder %s25, 3
      %p154 = por %p152, %p153
      %p155 = scmp.ne.s32.totalorder %s146, %s147
      %p156 = scmp.eq.s32.totalorder %s25, 0
      %p157 = por %p155, %p156
      %p158 = scmp.ne.s32.totalorder %s146, %s147
      %p159 = scmp.eq.s32.totalorder %s26, 3
      %p160 = por %p158, %p159
      %p162 = scmp.ne.s32.totalorder %s147, %s161
      %p163 = scmp.eq.s32.totalorder %s26, 0
      %p164 = por %p162, %p163
      %s165 = ssub.s32 %s27, %s39
      %p166 = scmp.eq.s32.totalorder %s165, 0
      %s168 = sadd.s32 %s167, 1
      %s169 = scalar_select %p166, %s167, %s168
      %p172 = pneg %p166
      %p173 = scmp.eq.s32.totalorder %s20, 3
      %p174 = por %p172, %p173
      %p175 = scmp.ne.s32.totalorder %s167, %s170
      %p176 = scmp.eq.s32.totalorder %s20, 0
      %p177 = por %p175, %p176
      %p178 = scmp.ne.s32.totalorder %s167, %s170
      %p179 = scmp.eq.s32.totalorder %s25, 3
      %p180 = por %p178, %p179
      %p181 = scmp.ne.s32.totalorder %s170, %s171
      %p182 = scmp.eq.s32.totalorder %s25, 0
      %p183 = por %p181, %p182
      %p184 = scmp.ne.s32.totalorder %s170, %s171
      %p185 = scmp.eq.s32.totalorder %s26, 3
      %p186 = por %p184, %p185
      %p188 = scmp.ne.s32.totalorder %s171, %s187
      %p189 = scmp.eq.s32.totalorder %s26, 0
      %p190 = por %p188, %p189
      %p191 = scmp.le.s32.totalorder 1, %s20
      %p192 = scmp.lt.s32.totalorder %s20, 5
      %p193 = pnand %p191, %p192
      %p194 = pneg %p193
      // Predicated region
      $region9: #{tpu_custom_call.1} parent=5 // pred_check
        _
      $region10: #{tpu_custom_call.1} parent=5 // pred_check_branch
        %196 = sbr.rel (%p193) target = $region12
      $region11: #{tpu_custom_call.1} parent=5 // pred_region
        %s197 = ssub.s32 %s20, 1
        // Predicated region
        $region13: #{tpu_custom_call.1} parent=11 // pred_check
          %p198 = pneg %p157
        $region14: #{tpu_custom_call.1} parent=11 // pred_check_branch
          %200 = sbr.rel (%p198) target = $region16
        $region15: #{tpu_custom_call.1} parent=11 // pred_region
          _
        $region16: #{tpu_custom_call.1} parent=11 // pred_fallthru
          _
      $region12: #{tpu_custom_call.1} parent=5 // pred_fallthru
        _
      %p201 = scmp.lt.s32.totalorder %s20, 4
      // Predicated region
      $region17: #{tpu_custom_call.1} parent=5 // pred_check
        %p202 = pneg %p201
      $region18: #{tpu_custom_call.1} parent=5 // pred_check_branch
        %204 = sbr.rel (%p202) target = $region20
      $region19: #{tpu_custom_call.1} parent=5 // pred_region
        // Predicated region
        $region21: #{tpu_custom_call.1} parent=19 // pred_check
          %p205 = pneg %p52
        $region22: #{tpu_custom_call.1} parent=19 // pred_check_branch
          %207 = sbr.rel (%p205) target = $region24
        $region23: #{tpu_custom_call.1} parent=19 // pred_region
          %s208 = sand.u32 %s42, 1
          %s209 = scalar_lea.sflag [#allocation4], %s208
          %s210 = sand.u32 %s42, 1
          %s211 = smul.addr %s210, 64
          %s212 = scalar_lea.vmem [#allocation3], %s211
          %s213 = smul.u32 8, %s27
          %s215 = ssub.s32 1024, 1024
          %216 = vsyncadd %s209, %s215
          %s217 = smul.addr %s213, 128
          %s218 = scalar_lea.hbm %s0, %s217
          %s219 = sshll.u32 %s212, 4
          %s220 = int_to_ptr.vmem [resolvable:$true] %s219
          %225 = dma.hbm_to_vmem [thread:$0]  %s218, 1024, %s220, %s209, 128, 128, 8
        $region24: #{tpu_custom_call.1} parent=19 // pred_fallthru
          _
        // Predicated region
        $region25: #{tpu_custom_call.1} parent=19 // pred_check
          %p226 = pneg %p78
        $region26: #{tpu_custom_call.1} parent=19 // pred_check_branch
          %228 = sbr.rel (%p226) target = $region28
        $region27: #{tpu_custom_call.1} parent=19 // pred_region
          %s229 = sand.u32 %s20, 1
          %s230 = scalar_lea.sflag [#allocation7], %s229
          %s231 = sand.u32 %s68, 1
          %s232 = smul.addr %s231, 64
          %s233 = scalar_lea.vmem [#allocation6], %s232
          %s235 = ssub.s32 1024, 1024
          %236 = vsyncadd %s230, %s235
          %s237 = smul.addr %s28, 64
          %s238 = scalar_lea.hbm %s1, %s237
          %s239 = sshll.u32 %s233, 4
          %s240 = int_to_ptr.vmem [resolvable:$true] %s239
          %245 = dma.hbm_to_vmem [thread:$0]  %s238, 1024, %s240, %s230, 128, 64, 4
        $region28: #{tpu_custom_call.1} parent=19 // pred_fallthru
          _
        // Predicated region
        $region29: #{tpu_custom_call.1} parent=19 // pred_check
          %p246 = pneg %p104
        $region30: #{tpu_custom_call.1} parent=19 // pred_check_branch
          %248 = sbr.rel (%p246) target = $region32
        $region31: #{tpu_custom_call.1} parent=19 // pred_region
          %p249 = scmp.lt.s32.totalorder %s28, 1
          %s250 = scalar_select %p249, %s28, 1
          %s251 = scalar_lea.vmem %s2, %s250
        $region32: #{tpu_custom_call.1} parent=19 // pred_fallthru
          _
        // Predicated region
        $region33: #{tpu_custom_call.1} parent=19 // pred_check
          %p252 = pneg %p130
        $region34: #{tpu_custom_call.1} parent=19 // pred_check_branch
          %254 = sbr.rel (%p252) target = $region36
        $region35: #{tpu_custom_call.1} parent=19 // pred_region
          %s255 = sand.u32 %s20, 1
          %s256 = scalar_lea.sflag [#allocation7], %s255
          %s257 = sand.u32 %s120, 1
          %s258 = smul.addr %s257, 64
          %s259 = scalar_lea.vmem [#allocation8], %s258
          %s260 = smul.u32 16, %s28
          %s262 = ssub.s32 1024, 1024
          %263 = vsyncadd %s256, %s262
          %s264 = smul.addr %s260, 64
          %s265 = scalar_lea.hbm %s3, %s264
          %s266 = sshll.u32 %s259, 4
          %s267 = int_to_ptr.vmem [resolvable:$true] %s266
          %272 = dma.hbm_to_vmem [thread:$0]  %s265, 1024, %s267, %s256, 64, 64, 4
        $region36: #{tpu_custom_call.1} parent=19 // pred_fallthru
          _
      $region20: #{tpu_custom_call.1} parent=5 // pred_fallthru
        _
      %p273 = scmp.le.s32.totalorder 1, %s20
      %p274 = scmp.lt.s32.totalorder %s20, 5
      %p275 = pnand %p273, %p274
      %p276 = pneg %p275
      // Predicated region
      $region37: #{tpu_custom_call.1} parent=5 // pred_check
        _
      $region38: #{tpu_custom_call.1} parent=5 // pred_check_branch
        %278 = sbr.rel (%p275) target = $region40
      $region39: #{tpu_custom_call.1} parent=5 // pred_region
        %s279 = ssub.s32 %s20, 1
        %s280 = sand.u32 %s45, 1
        %s281 = scalar_lea.sflag [#allocation4], %s280
        %s282 = sand.u32 %s45, 1
        %s283 = smul.addr %s282, 64
        %s284 = scalar_lea.vmem [#allocation3], %s283
        // Predicated region
        $region41: #{tpu_custom_call.1} parent=39 // pred_check
          %p285 = pneg %p58
        $region42: #{tpu_custom_call.1} parent=39 // pred_check_branch
          %287 = sbr.rel (%p285) target = $region44
        $region43: #{tpu_custom_call.1} parent=39 // pred_region
          %288 = dma.done %s281, 1024
        $region44: #{tpu_custom_call.1} parent=39 // pred_fallthru
          _
        %s289 = sand.u32 %s25, 1
        %s290 = scalar_lea.sflag [#allocation7], %s289
        %s291 = sand.u32 %s71, 1
        %s292 = smul.addr %s291, 64
        %s293 = scalar_lea.vmem [#allocation6], %s292
        // Predicated region
        $region45: #{tpu_custom_call.1} parent=39 // pred_check
          %p294 = pneg %p84
        $region46: #{tpu_custom_call.1} parent=39 // pred_check_branch
          %296 = sbr.rel (%p294) target = $region48
        $region47: #{tpu_custom_call.1} parent=39 // pred_region
          %297 = dma.done %s290, 1024
        $region48: #{tpu_custom_call.1} parent=39 // pred_fallthru
          _
        %s298 = sand.u32 %s25, 1
        %s299 = scalar_lea.sflag [#allocation7], %s298
        %s300 = sand.u32 %s123, 1
        %s301 = smul.addr %s300, 64
        %s302 = scalar_lea.vmem [#allocation8], %s301
        // Predicated region
        $region49: #{tpu_custom_call.1} parent=39 // pred_check
          %p303 = pneg %p136
        $region50: #{tpu_custom_call.1} parent=39 // pred_check_branch
          %305 = sbr.rel (%p303) target = $region52
        $region51: #{tpu_custom_call.1} parent=39 // pred_region
          %306 = dma.done %s299, 1024
        $region52: #{tpu_custom_call.1} parent=39 // pred_fallthru
          _
        %s307 = sand.u32 %s45, 1
        %s308 = scalar_lea.sflag [#allocation4], %s307
        %s309 = sand.u32 %s45, 1
        %s310 = smul.addr %s309, 64
        %s311 = scalar_lea.vmem [#allocation3], %s310
        %p312 = pneg %p58
        %p313 = pneg %p55
        %s314 = sand.u32 %s25, 1
        %s315 = scalar_lea.sflag [#allocation7], %s314
        %s316 = sand.u32 %s71, 1
        %s317 = smul.addr %s316, 64
        %s318 = scalar_lea.vmem [#allocation6], %s317
        %p319 = pneg %p84
        %p320 = pneg %p81
        %p321 = scmp.lt.s32.totalorder %s30, 1
        %s322 = scalar_select %p321, %s30, 1
        %s323 = scalar_lea.vmem %s2, %s322
        %p324 = pneg %p110
        %p325 = pneg %p107
        %s326 = sand.u32 %s25, 1
        %s327 = scalar_lea.sflag [#allocation7], %s326
        %s328 = sand.u32 %s123, 1
        %s329 = smul.addr %s328, 64
        %s330 = scalar_lea.vmem [#allocation8], %s329
        %p331 = pneg %p136
        %p332 = pneg %p133
        %p333 = pneg %p157
        %p334 = pneg %p154
        %p335 = pneg %p183
        %p336 = pneg %p180
        %s337 = sand.u32 %s170, 1
        %s338 = scalar_lea.sflag [#allocation5], %s337
        %s339 = sand.u32 %s170, 1
        %s340 = smul.addr %s339, 64
        %s341 = scalar_lea.vmem [#allocation9], %s340
        %s342 = smul.u32 8, %s29
        %p343 = scmp.lt.s32.totalorder %s30, 1
        %s344 = scalar_select %p343, %s30, 1
        %s345 = scalar_lea.vmem %s2, %s344
        %s346 = smul.u32 16, %s30
        %s347 = smul.u32 8, %s29
        %p349 = scmp.eq.s32.totalorder %s30, 0
        // Predicated region
        $region53: #{tpu_custom_call.1} parent=39 // pred_check
          %p350 = pneg %p349
        $region54: #{tpu_custom_call.1} parent=39 // pred_check_branch
          %352 = sbr.rel (%p350) target = $region56
        $region55: #{tpu_custom_call.1} parent=39 // pred_region
          %353 = vst [vmem:[#allocation2] sm:$0xff] 0.0
          %354 = vst [vmem:[#allocation2 + $0x8] sm:$0xff] 0.0
          %355 = vst [vmem:[#allocation2 + $0x10] sm:$0xff] 0.0
          %356 = vst [vmem:[#allocation2 + $0x18] sm:$0xff] 0.0
          %357 = vst [vmem:[#allocation2 + $0x20] sm:$0xff] 0.0
          %358 = vst [vmem:[#allocation2 + $0x28] sm:$0xff] 0.0
          %359 = vst [vmem:[#allocation2 + $0x30] sm:$0xff] 0.0
          %360 = vst [vmem:[#allocation2 + $0x38] sm:$0xff] 0.0
        $region56: #{tpu_custom_call.1} parent=39 // pred_fallthru
          _
        %v361 = vld [vmem:[%s284] sm:$0xff]
        %v362 = vld [vmem:[%s284 + $0x8] sm:$0xff]
        %v363 = vld [vmem:[%s284 + $0x10] sm:$0xff]
        %v364 = vld [vmem:[%s284 + $0x18] sm:$0xff]
        %v365 = vld [vmem:[%s284 + $0x20] sm:$0xff]
        %v366 = vld [vmem:[%s284 + $0x28] sm:$0xff]
        %v367 = vld [vmem:[%s284 + $0x30] sm:$0xff]
        %v368 = vld [vmem:[%s284 + $0x38] sm:$0xff]
        %v369 = vpack.c.bf16 %v362, %v361
        %v370 = vpack.c.bf16 %v364, %v363
        %v371 = vpack.c.bf16 %v366, %v365
        %v372 = vpack.c.bf16 %v368, %v367
        %v373 = vld [vmem:[%s293] sm:$0xf]
        %v374 = vld [vmem:[%s293 + $0x4] sm:$0xf]
        %v375 = vld [vmem:[%s293 + $0x8] sm:$0xf]
        %v376 = vld [vmem:[%s293 + $0xc] sm:$0xf]
        %v377 = vld [vmem:[%s293 + $0x10] sm:$0xf]
        %v378 = vld [vmem:[%s293 + $0x14] sm:$0xf]
        %v379 = vld [vmem:[%s293 + $0x18] sm:$0xf]
        %v380 = vld [vmem:[%s293 + $0x1c] sm:$0xf]
        %v381 = vld [vmem:[%s293 + $0x20] sm:$0xf]
        %v382 = vld [vmem:[%s293 + $0x24] sm:$0xf]
        %v383 = vld [vmem:[%s293 + $0x28] sm:$0xf]
        %v384 = vld [vmem:[%s293 + $0x2c] sm:$0xf]
        %v385 = vld [vmem:[%s293 + $0x30] sm:$0xf]
        %v386 = vld [vmem:[%s293 + $0x34] sm:$0xf]
        %v387 = vld [vmem:[%s293 + $0x38] sm:$0xf]
        %v388 = vld [vmem:[%s293 + $0x3c] sm:$0xf]
        %v389 = vld [vmem:[%s345] sm:$0x1]
        %v391 = vlaneseq
        %v392 = vshrl.u32 %v391, 7
        %v393 = vsub.s32 0, %v392
        %v394 = vrot.slane %v389, %v393
        %v412 = vunpack.c.l.b16 %v373
        %v413 = vunpack.c.l.b16 %v374
        %v414 = vunpack.c.l.b16 %v375
        %v415 = vunpack.c.l.b16 %v376
        %v416 = vunpack.c.l.b16 %v377
        %v417 = vunpack.c.l.b16 %v378
        %v418 = vunpack.c.l.b16 %v379
        %v419 = vunpack.c.l.b16 %v380
        %v420 = vunpack.c.l.b16 %v381
        %v421 = vunpack.c.l.b16 %v382
        %v422 = vunpack.c.l.b16 %v383
        %v423 = vunpack.c.l.b16 %v384
        %v424 = vunpack.c.l.b16 %v385
        %v425 = vunpack.c.l.b16 %v386
        %v426 = vunpack.c.l.b16 %v387
        %v427 = vunpack.c.l.b16 %v388
        %v428 = vpack.c.b16 %v413, %v412
        %v429 = vpack.c.b16 %v415, %v414
        %v430 = vpack.c.b16 %v417, %v416
        %v431 = vpack.c.b16 %v419, %v418
        %v432 = vpack.c.b16 %v421, %v420
        %v433 = vpack.c.b16 %v423, %v422
        %v434 = vpack.c.b16 %v425, %v424
        %v435 = vpack.c.b16 %v427, %v426
        %444 = vmatprep.subr.bf16.mxu0 0
        %445 = vmatpush1.bf16.msra.mxu0 %v428
        %446 = vmatprep.subr.bf16.mxu0 0
        %447 = vmatpush1.bf16.msra.mxu0 %v429
        %448 = vmatprep.subr.bf16.mxu0 0
        %449 = vmatpush1.bf16.msra.mxu0 %v430
        %450 = vmatprep.subr.bf16.mxu0 0
        %451 = vmatpush1.bf16.msra.mxu0 %v431
        %452 = vmatprep.subr.bf16.mxu0 0
        %453 = vmatpush1.bf16.msra.mxu0 %v432
        %454 = vmatprep.subr.bf16.mxu0 0
        %455 = vmatpush1.bf16.msra.mxu0 %v433
        %456 = vmatprep.subr.bf16.mxu0 0
        %457 = vmatpush1.bf16.msra.mxu0 %v434
        %458 = vmatprep.subr.bf16.mxu0 0
        %459 = vmatpush1.bf16.msra.mxu0 %v435
        %460 = vmatprep.subr.bf16.mxu0 0
        %461 = vmatpush1.bf16.msra.mxu0 0
        %462 = vmatprep.subr.bf16.mxu0 0
        %463 = vmatpush1.bf16.msra.mxu0 0
        %464 = vmatprep.subr.bf16.mxu0 0
        %465 = vmatpush1.bf16.msra.mxu0 0
        %466 = vmatprep.subr.bf16.mxu0 0
        %467 = vmatpush1.bf16.msra.mxu0 0
        %468 = vmatprep.subr.bf16.mxu0 0
        %469 = vmatpush1.bf16.msra.mxu0 0
        %470 = vmatprep.subr.bf16.mxu0 0
        %471 = vmatpush1.bf16.msra.mxu0 0
        %472 = vmatprep.subr.bf16.mxu0 0
        %473 = vmatpush1.bf16.msra.mxu0 0
        %474 = vmatprep.subr.bf16.mxu0 0
        %475 = vmatpush1.bf16.msra.mxu0 0
        %476 = vmatprep.mubr.bf16.mxu0 0
        %477 = vmatmul.mubr.bf16.gmra.mrb[0].mxu0 %v369
        %v478 = vpop.f32.mrb[0].mxu0
        %v479 = vadd.f32 %v394, %v478
        %v480 = vpop.f32.mrb[0].mxu0
        %v481 = vpop.f32.mrb[0].mxu0
        %v482 = vadd.f32 %v394, %v481
        %v483 = vpop.f32.mrb[0].mxu0
        %484 = vmatprep.mubr.bf16.mxu0 0
        %485 = vmatmul.mubr.bf16.gmra.mrb[0].mxu0 %v370
        %v486 = vpop.f32.mrb[0].mxu0
        %v487 = vadd.f32 %v394, %v486
        %v488 = vpop.f32.mrb[0].mxu0
        %v489 = vpop.f32.mrb[0].mxu0
        %v490 = vadd.f32 %v394, %v489
        %v491 = vpop.f32.mrb[0].mxu0
        %492 = vmatprep.mubr.bf16.mxu0 0
        %493 = vmatmul.mubr.bf16.gmra.mrb[0].mxu0 %v371
        %v494 = vpop.f32.mrb[0].mxu0
        %v495 = vadd.f32 %v394, %v494
        %v496 = vpop.f32.mrb[0].mxu0
        %v497 = vpop.f32.mrb[0].mxu0
        %v498 = vadd.f32 %v394, %v497
        %v499 = vpop.f32.mrb[0].mxu0
        %500 = vmatprep.mubr.bf16.mxu0 0
        %501 = vmatmul.mubr.bf16.gmra.mrb[0].mxu0 %v372
        %v502 = vpop.f32.mrb[0].mxu0
        %v503 = vadd.f32 %v394, %v502
        %v504 = vpop.f32.mrb[0].mxu0
        %v505 = vpop.f32.mrb[0].mxu0
        %v506 = vadd.f32 %v394, %v505
        %v507 = vpop.f32.mrb[0].mxu0
        %508 = vdwg.mxu0
        %v509 = vmul.f32 %v479, 0.5
        %v510 = vmul.f32 %v482, 0.5
        %v511 = vmul.f32 %v487, 0.5
        %v512 = vmul.f32 %v490, 0.5
        %v513 = vmul.f32 %v495, 0.5
        %v514 = vmul.f32 %v498, 0.5
        %v515 = vmul.f32 %v503, 0.5
        %v516 = vmul.f32 %v506, 0.5
        %v517 = vmul.f32 %v479, %v479
        %v518 = vmul.f32 %v482, %v482
        %v519 = vmul.f32 %v487, %v487
        %v520 = vmul.f32 %v490, %v490
        %v521 = vmul.f32 %v495, %v495
        %v522 = vmul.f32 %v498, %v498
        %v523 = vmul.f32 %v503, %v503
        %v524 = vmul.f32 %v506, %v506
        %v525 = vmul.f32 %v517, %v479
        %v526 = vmul.f32 %v518, %v482
        %v527 = vmul.f32 %v519, %v487
        %v528 = vmul.f32 %v520, %v490
        %v529 = vmul.f32 %v521, %v495
        %v530 = vmul.f32 %v522, %v498
        %v531 = vmul.f32 %v523, %v503
        %v532 = vmul.f32 %v524, %v506
        %v533 = vmul.f32 %v525, 0.044715
        %v534 = vmul.f32 %v526, 0.044715
        %v535 = vmul.f32 %v527, 0.044715
        %v536 = vmul.f32 %v528, 0.044715
        %v537 = vmul.f32 %v529, 0.044715
        %v538 = vmul.f32 %v530, 0.044715
        %v539 = vmul.f32 %v531, 0.044715
        %v540 = vmul.f32 %v532, 0.044715
        %v541 = vadd.f32 %v479, %v533
        %v542 = vadd.f32 %v482, %v534
        %v543 = vadd.f32 %v487, %v535
        %v544 = vadd.f32 %v490, %v536
        %v545 = vadd.f32 %v495, %v537
        %v546 = vadd.f32 %v498, %v538
        %v547 = vadd.f32 %v503, %v539
        %v548 = vadd.f32 %v506, %v540
        %v549 = vmul.f32 %v541, 0.7978846
        %v550 = vmul.f32 %v542, 0.7978846
        %v551 = vmul.f32 %v543, 0.7978846
        %v552 = vmul.f32 %v544, 0.7978846
        %v553 = vmul.f32 %v545, 0.7978846
        %v554 = vmul.f32 %v546, 0.7978846
        %v555 = vmul.f32 %v547, 0.7978846
        %v556 = vmul.f32 %v548, 0.7978846
        %v557 = vtanh.pop %v549
        %v558 = vtanh.pop %v550
        %v559 = vtanh.pop %v551
        %v560 = vtanh.pop %v552
        %v561 = vtanh.pop %v553
        %v562 = vtanh.pop %v554
        %v563 = vtanh.pop %v555
        %v564 = vtanh.pop %v556
        %v565 = vadd.f32 %v557, 1.0
        %v566 = vadd.f32 %v558, 1.0
        %v567 = vadd.f32 %v559, 1.0
        %v568 = vadd.f32 %v560, 1.0
        %v569 = vadd.f32 %v561, 1.0
        %v570 = vadd.f32 %v562, 1.0
        %v571 = vadd.f32 %v563, 1.0
        %v572 = vadd.f32 %v564, 1.0
        %v573 = vmul.f32 %v509, %v565
        %v574 = vmul.f32 %v510, %v566
        %v575 = vmul.f32 %v511, %v567
        %v576 = vmul.f32 %v512, %v568
        %v577 = vmul.f32 %v513, %v569
        %v578 = vmul.f32 %v514, %v570
        %v579 = vmul.f32 %v515, %v571
        %v580 = vmul.f32 %v516, %v572
        %v581 = vld [vmem:[#allocation2] sm:$0xff]
        %v582 = vld [vmem:[#allocation2 + $0x8] sm:$0xff]
        %v583 = vld [vmem:[#allocation2 + $0x10] sm:$0xff]
        %v584 = vld [vmem:[#allocation2 + $0x18] sm:$0xff]
        %v585 = vld [vmem:[#allocation2 + $0x20] sm:$0xff]
        %v586 = vld [vmem:[#allocation2 + $0x28] sm:$0xff]
        %v587 = vld [vmem:[#allocation2 + $0x30] sm:$0xff]
        %v588 = vld [vmem:[#allocation2 + $0x38] sm:$0xff]
        %v589 = vpack.c.bf16 %v574, %v573
        %v590 = vpack.c.bf16 %v576, %v575
        %v591 = vpack.c.bf16 %v578, %v577
        %v592 = vpack.c.bf16 %v580, %v579
        %v593 = vld [vmem:[%s302] sm:$0xf]
        %v594 = vld [vmem:[%s302 + $0x4] sm:$0xf]
        %v595 = vld [vmem:[%s302 + $0x8] sm:$0xf]
        %v596 = vld [vmem:[%s302 + $0xc] sm:$0xf]
        %v597 = vld [vmem:[%s302 + $0x10] sm:$0xf]
        %v598 = vld [vmem:[%s302 + $0x14] sm:$0xf]
        %v599 = vld [vmem:[%s302 + $0x18] sm:$0xf]
        %v600 = vld [vmem:[%s302 + $0x1c] sm:$0xf]
        %v601 = vld [vmem:[%s302 + $0x20] sm:$0xf]
        %v602 = vld [vmem:[%s302 + $0x24] sm:$0xf]
        %v603 = vld [vmem:[%s302 + $0x28] sm:$0xf]
        %v604 = vld [vmem:[%s302 + $0x2c] sm:$0xf]
        %v605 = vld [vmem:[%s302 + $0x30] sm:$0xf]
        %v606 = vld [vmem:[%s302 + $0x34] sm:$0xf]
        %v607 = vld [vmem:[%s302 + $0x38] sm:$0xf]
        %v608 = vld [vmem:[%s302 + $0x3c] sm:$0xf]
        %v625 = vunpack.c.l.b16 %v593
        %v626 = vunpack.c.l.b16 %v594
        %v627 = vunpack.c.l.b16 %v595
        %v628 = vunpack.c.l.b16 %v596
        %v629 = vunpack.c.l.b16 %v597
        %v630 = vunpack.c.l.b16 %v598
        %v631 = vunpack.c.l.b16 %v599
        %v632 = vunpack.c.l.b16 %v600
        %v633 = vunpack.c.l.b16 %v601
        %v634 = vunpack.c.l.b16 %v602
        %v635 = vunpack.c.l.b16 %v603
        %v636 = vunpack.c.l.b16 %v604
        %v637 = vunpack.c.l.b16 %v605
        %v638 = vunpack.c.l.b16 %v606
        %v639 = vunpack.c.l.b16 %v607
        %v640 = vunpack.c.l.b16 %v608
        %v641 = vpack.c.b16 %v626, %v625
        %v642 = vpack.c.b16 %v628, %v627
        %v643 = vpack.c.b16 %v630, %v629
        %v644 = vpack.c.b16 %v632, %v631
        %v645 = vpack.c.b16 %v634, %v633
        %v646 = vpack.c.b16 %v636, %v635
        %v647 = vpack.c.b16 %v638, %v637
        %v648 = vpack.c.b16 %v640, %v639
        %657 = vmatprep.subr.bf16.mxu0 0
        %658 = vmatpush1.bf16.msra.mxu0 %v641
        %659 = vmatprep.subr.bf16.mxu0 0
        %660 = vmatpush1.bf16.msra.mxu0 %v642
        %661 = vmatprep.subr.bf16.mxu0 0
        %662 = vmatpush1.bf16.msra.mxu0 %v643
        %663 = vmatprep.subr.bf16.mxu0 0
        %664 = vmatpush1.bf16.msra.mxu0 %v644
        %665 = vmatprep.subr.bf16.mxu0 0
        %666 = vmatpush1.bf16.msra.mxu0 %v645
        %667 = vmatprep.subr.bf16.mxu0 0
        %668 = vmatpush1.bf16.msra.mxu0 %v646
        %669 = vmatprep.subr.bf16.mxu0 0
        %670 = vmatpush1.bf16.msra.mxu0 %v647
        %671 = vmatprep.subr.bf16.mxu0 0
        %672 = vmatpush1.bf16.msra.mxu0 %v648
        %673 = vmatprep.subr.bf16.mxu0 0
        %674 = vmatpush1.bf16.msra.mxu0 0
        %675 = vmatprep.subr.bf16.mxu0 0
        %676 = vmatpush1.bf16.msra.mxu0 0
        %677 = vmatprep.subr.bf16.mxu0 0
        %678 = vmatpush1.bf16.msra.mxu0 0
        %679 = vmatprep.subr.bf16.mxu0 0
        %680 = vmatpush1.bf16.msra.mxu0 0
        %681 = vmatprep.subr.bf16.mxu0 0
        %682 = vmatpush1.bf16.msra.mxu0 0
        %683 = vmatprep.subr.bf16.mxu0 0
        %684 = vmatpush1.bf16.msra.mxu0 0
        %685 = vmatprep.subr.bf16.mxu0 0
        %686 = vmatpush1.bf16.msra.mxu0 0
        %687 = vmatprep.subr.bf16.mxu0 0
        %688 = vmatpush1.bf16.msra.mxu0 0
        %689 = vmatprep.mubr.bf16.mxu0 0
        %690 = vmatmul.mubr.bf16.gmra.mrb[0].mxu0 %v589
        %v691 = vpop.f32.mrb[0].mxu0
        %v692 = vadd.f32 0.0, %v691
        %v693 = vpop.f32.mrb[0].mxu0
        %v694 = vpop.f32.mrb[0].mxu0
        %v695 = vadd.f32 0.0, %v694
        %v696 = vpop.f32.mrb[0].mxu0
        %697 = vmatprep.mubr.bf16.mxu0 0
        %698 = vmatmul.mubr.bf16.gmra.mrb[0].mxu0 %v590
        %v699 = vpop.f32.mrb[0].mxu0
        %v700 = vadd.f32 0.0, %v699
        %v701 = vpop.f32.mrb[0].mxu0
        %v702 = vpop.f32.mrb[0].mxu0
        %v703 = vadd.f32 0.0, %v702
        %v704 = vpop.f32.mrb[0].mxu0
        %705 = vmatprep.mubr.bf16.mxu0 0
        %706 = vmatmul.mubr.bf16.gmra.mrb[0].mxu0 %v591
        %v707 = vpop.f32.mrb[0].mxu0
        %v708 = vadd.f32 0.0, %v707
        %v709 = vpop.f32.mrb[0].mxu0
        %v710 = vpop.f32.mrb[0].mxu0
        %v711 = vadd.f32 0.0, %v710
        %v712 = vpop.f32.mrb[0].mxu0
        %713 = vmatprep.mubr.bf16.mxu0 0
        %714 = vmatmul.mubr.bf16.gmra.mrb[0].mxu0 %v592
        %v715 = vpop.f32.mrb[0].mxu0
        %v716 = vadd.f32 0.0, %v715
        %v717 = vpop.f32.mrb[0].mxu0
        %v718 = vpop.f32.mrb[0].mxu0
        %v719 = vadd.f32 0.0, %v718
        %v720 = vpop.f32.mrb[0].mxu0
        %721 = vdwg.mxu0
        %v722 = vadd.f32 %v581, %v692
        %v723 = vadd.f32 %v582, %v695
        %v724 = vadd.f32 %v583, %v700
        %v725 = vadd.f32 %v584, %v703
        %v726 = vadd.f32 %v585, %v708
        %v727 = vadd.f32 %v586, %v711
        %v728 = vadd.f32 %v587, %v716
        %v729 = vadd.f32 %v588, %v719
        %730 = vst [vmem:[#allocation2] sm:$0xff] %v722
        %731 = vst [vmem:[#allocation2 + $0x8] sm:$0xff] %v723
        %732 = vst [vmem:[#allocation2 + $0x10] sm:$0xff] %v724
        %733 = vst [vmem:[#allocation2 + $0x18] sm:$0xff] %v725
        %734 = vst [vmem:[#allocation2 + $0x20] sm:$0xff] %v726
        %735 = vst [vmem:[#allocation2 + $0x28] sm:$0xff] %v727
        %736 = vst [vmem:[#allocation2 + $0x30] sm:$0xff] %v728
        %737 = vst [vmem:[#allocation2 + $0x38] sm:$0xff] %v729
        %p738 = scmp.eq.s32.totalorder %s30, 1
        // Predicated region
        $region57: #{tpu_custom_call.1} parent=39 // pred_check
          %p739 = pneg %p738
        $region58: #{tpu_custom_call.1} parent=39 // pred_check_branch
          %741 = sbr.rel (%p739) target = $region60
        $region59: #{tpu_custom_call.1} parent=39 // pred_region
          %v742 = vld [vmem:[#allocation2] sm:$0xff]
          %v743 = vld [vmem:[#allocation2 + $0x8] sm:$0xff]
          %v744 = vld [vmem:[#allocation2 + $0x10] sm:$0xff]
          %v745 = vld [vmem:[#allocation2 + $0x18] sm:$0xff]
          %v746 = vld [vmem:[#allocation2 + $0x20] sm:$0xff]
          %v747 = vld [vmem:[#allocation2 + $0x28] sm:$0xff]
          %v748 = vld [vmem:[#allocation2 + $0x30] sm:$0xff]
          %v749 = vld [vmem:[#allocation2 + $0x38] sm:$0xff]
          %v750 = vld [vmem:[%s4] sm:$0x1]
          %v752 = vlaneseq
          %v753 = vshrl.u32 %v752, 7
          %v754 = vsub.s32 0, %v753
          %v755 = vrot.slane %v750, %v754
          %v757 = vadd.f32 %v742, %v755
          %v758 = vadd.f32 %v743, %v755
          %v759 = vadd.f32 %v744, %v755
          %v760 = vadd.f32 %v745, %v755
          %v761 = vadd.f32 %v746, %v755
          %v762 = vadd.f32 %v747, %v755
          %v763 = vadd.f32 %v748, %v755
          %v764 = vadd.f32 %v749, %v755
          %765 = vst [vmem:[%s341] sm:$0xff] %v757
          %766 = vst [vmem:[%s341 + $0x8] sm:$0xff] %v758
          %767 = vst [vmem:[%s341 + $0x10] sm:$0xff] %v759
          %768 = vst [vmem:[%s341 + $0x18] sm:$0xff] %v760
          %769 = vst [vmem:[%s341 + $0x20] sm:$0xff] %v761
          %770 = vst [vmem:[%s341 + $0x28] sm:$0xff] %v762
          %771 = vst [vmem:[%s341 + $0x30] sm:$0xff] %v763
          %772 = vst [vmem:[%s341 + $0x38] sm:$0xff] %v764
        $region60: #{tpu_custom_call.1} parent=39 // pred_fallthru
          _
        %s773 = sand.u32 %s170, 1
        %s774 = scalar_lea.sflag [#allocation5], %s773
        %s775 = sand.u32 %s170, 1
        %s776 = smul.addr %s775, 64
        %s777 = scalar_lea.vmem [#allocation9], %s776
        // Predicated region
        $region61: #{tpu_custom_call.1} parent=39 // pred_check
          %p778 = pneg %p180
        $region62: #{tpu_custom_call.1} parent=39 // pred_check_branch
          %780 = sbr.rel (%p778) target = $region64
        $region63: #{tpu_custom_call.1} parent=39 // pred_region
          %s781 = smul.u32 8, %s29
          %s783 = ssub.s32 1024, 1024
          %784 = vsyncadd %s774, %s783
          %s785 = smul.addr %s781, 128
          %s786 = scalar_lea.hbm %s5, %s785
          %s787 = sshll.u32 %s777, 4
          %s788 = int_to_ptr.vmem [resolvable:$true] %s787
          %793 = dma.vmem_to_hbm [thread:$0]  %s788, 1024, %s786, %s774, 128, 128, 8
        $region64: #{tpu_custom_call.1} parent=39 // pred_fallthru
          _
      $region40: #{tpu_custom_call.1} parent=5 // pred_fallthru
        _
      %p794 = scmp.le.s32.totalorder 2, %s20
      // Predicated region
      $region65: #{tpu_custom_call.1} parent=5 // pred_check
        %p795 = pneg %p794
      $region66: #{tpu_custom_call.1} parent=5 // pred_check_branch
        %797 = sbr.rel (%p795) target = $region68
      $region67: #{tpu_custom_call.1} parent=5 // pred_region
        %s798 = ssub.s32 %s20, 2
        // Predicated region
        $region69: #{tpu_custom_call.1} parent=67 // pred_check
          %p799 = pneg %p186
        $region70: #{tpu_custom_call.1} parent=67 // pred_check_branch
          %801 = sbr.rel (%p799) target = $region72
        $region71: #{tpu_custom_call.1} parent=67 // pred_region
          %s802 = sand.u32 %s171, 1
          %s803 = scalar_lea.sflag [#allocation5], %s802
          %s804 = sand.u32 %s171, 1
          %s805 = smul.addr %s804, 64
          %s806 = scalar_lea.vmem [#allocation9], %s805
          %807 = dma.done %s803, 1024
        $region72: #{tpu_custom_call.1} parent=67 // pred_fallthru
          _
      $region68: #{tpu_custom_call.1} parent=5 // pred_fallthru
        _
    $region6: #{tpu_custom_call.1} parent=1 // loop_footer
      %s24 = sadd.s32 1, %s20
    $region7: #{tpu_custom_call.1} parent=1 // loop_footer_branch
      %19 = sbr.rel target = $region3
    $region8: #{tpu_custom_call.1} parent=1 // loop_exit
      _
    %808 = vsyncpa [#allocation4], 1
    %s809 = scalar_lea.sflag [#allocation4], 1
    %810 = vsyncpa %s809, 1
    %811 = vsyncpa [#allocation7], 1
    %s812 = scalar_lea.sflag [#allocation7], 1
    %813 = vsyncpa %s812, 1
    %814 = vsyncpa [#allocation5], 1
    %s815 = scalar_lea.sflag [#allocation5], 1
    %816 = vsyncpa %s815, 1

</llo_original>
